<compile_context>
chip_gen: v5e
topology: v5e:2x2
jax: 0.10.0
libtpu: 0.0.40
codegen_flags: <defaults>
</compile_context>

<pallas_src>
import functools

import jax
import jax.numpy as jnp
from jax import lax
from jax.experimental import pallas as pl
from jax.experimental.pallas import tpu as pltpu


# ----------------------------------- kernel -----------------------------------

def mlp_kernel(*refs, n_hidden, chunk_b, act_dtype):
    """Transposed tanh-MLP forward with an inner vreg-sized chunk loop.

      x_ref:      (D_in+1, TILE_B)  matmul dtype; last row is constant 1 (bias fold)
      w_in_ref:   (H, D_in+1)       matmul dtype == [W_in^T | b_in]
      w_hid_ref:  (L-1, H, H)       matmul dtype == stacked W_k^T   (absent if L == 1)
      b_hid_ref:  (L-1, H, 1)       act_dtype                        (absent if L == 1)
      w_out_ref:  (D_out, H)        matmul dtype == W_out^T
      b_out_ref:  (D_out, 1)        f32
      o_ref:      (D_out, TILE_B)   out dtype (lane-dense store along TILE_B)
    """
    if n_hidden > 0:
        (x_ref, w_in_ref, w_hid_ref, b_hid_ref, w_out_ref, b_out_ref, o_ref) = refs
    else:
        (x_ref, w_in_ref, w_out_ref, b_out_ref, o_ref) = refs
        w_hid_ref = b_hid_ref = None

    mm_dtype = w_in_ref.dtype
    tile_b = x_ref.shape[1]
    assert tile_b % chunk_b == 0
    n_chunks = tile_b // chunk_b

    def chunk_body(c, carry):
        start = pl.multiple_of(c * chunk_b, chunk_b)
        xc = x_ref[:, pl.ds(start, chunk_b)]                     # (D_in+1, chunk)

        # Input layer: bias rides the matmul (ones row x bias column), f32 MXU acc.
        h = jnp.tanh(
            jnp.dot(w_in_ref[...], xc,
                    preferred_element_type=jnp.float32).astype(act_dtype))

        # Hidden layers (static unroll over layers; n_hidden is compile-time).
        for k in range(n_hidden):
            h = jnp.tanh(
                jnp.dot(w_hid_ref[k], h.astype(mm_dtype),
                        preferred_element_type=jnp.float32).astype(act_dtype)
                + b_hid_ref[k])

        # Output layer (no activation); (D_out, chunk) store is lane-dense.
        y = (jnp.dot(w_out_ref[...], h.astype(mm_dtype),
                     preferred_element_type=jnp.float32)
             + b_out_ref[...])
        o_ref[:, pl.ds(start, chunk_b)] = y.astype(o_ref.dtype)
        return carry

    lax.fori_loop(0, n_chunks, chunk_body, 0, unroll=True)


# ------------------------------ wrapper / plumbing ------------------------------

def default_activation_dtype():
    """bf16 activation math only on generations with bf16 VALU/EUP (v6e, v7x)."""
    try:
        kind = jax.devices()[0].device_kind.lower()
    except Exception:
        return jnp.float32
    if any(tag in kind for tag in ("v6", "v7", "tpu7")):
        return jnp.bfloat16
    return jnp.float32


def _effective_tile(batch, tile_b, chunk_b):
    assert chunk_b % 128 == 0, "chunk_b must be a multiple of 128 (lane width)"
    assert tile_b % chunk_b == 0, "tile_b must be a multiple of chunk_b"
    tile_b = max(chunk_b, min(tile_b, chunk_b * pl.cdiv(batch, chunk_b)))
    b_pad = tile_b * pl.cdiv(batch, tile_b)
    return tile_b, b_pad


def prepare_inputs(x, *, tile_b=4096, chunk_b=512, matmul_dtype=jnp.bfloat16):
    """One-time layout pass: (B, D_in) f32 -> (D_in+1, B_pad) matmul_dtype.

    Puts the batch on the lane axis and appends a constant-ones row so the input-layer
    bias is folded into the matmul.  For PINN training where the same collocation points
    are reused every step, call this once, cache the result, and feed it to
    `mlp_forward_prepared` to keep the transpose/pad/cast out of the per-step path.
    """
    batch, _ = x.shape
    _, b_pad = _effective_tile(batch, tile_b, chunk_b)
    xt = jnp.concatenate([jnp.transpose(x), jnp.ones((1, batch), x.dtype)], axis=0)
    if b_pad != batch:
        xt = jnp.pad(xt, ((0, 0), (0, b_pad - batch)))
    return xt.astype(matmul_dtype)


def prepare_params(w_in, b_in, w_hid, b_hid, w_out, b_out, *, n_hidden_layers,
                   matmul_dtype=jnp.bfloat16, activation_dtype=jnp.float32):
    """Pack weights into the kernel's transposed layout (cacheable)."""
    hidden = w_in.shape[1]
    d_out = w_out.shape[1]
    n_hidden = n_hidden_layers - 1
    # Input layer: W_in^T with the bias folded in as an extra column -> (H, D_in+1).
    w_in_aug = jnp.concatenate(
        [jnp.transpose(w_in), jnp.reshape(b_in, (hidden, 1))], axis=1
    ).astype(matmul_dtype)
    w_out_t = jnp.transpose(w_out).astype(matmul_dtype)              # (D_out, H)
    b_out_t = jnp.reshape(b_out, (d_out, 1)).astype(jnp.float32)     # (D_out, 1)
    if n_hidden > 0:
        w_hid_t = jnp.swapaxes(w_hid, 1, 2).astype(matmul_dtype)     # (L-1, H, H)
        b_hid_t = jnp.swapaxes(b_hid, 1, 2).astype(activation_dtype)  # (L-1, H, 1)
        return (w_in_aug, w_hid_t, b_hid_t, w_out_t, b_out_t)
    return (w_in_aug, w_out_t, b_out_t)


def mlp_forward_prepared(xt, packed_params, *, n_hidden_layers, tile_b=4096,
                         chunk_b=512, activation_dtype=None, out_dtype=jnp.float32):
    """Run the pallas kernel on pre-packed inputs/params.  Returns (D_out, B_pad)."""
    if activation_dtype is None:
        activation_dtype = default_activation_dtype()
    n_hidden = n_hidden_layers - 1

    if n_hidden > 0:
        w_in_aug, w_hid_t, b_hid_t, w_out_t, b_out_t = packed_params
    else:
        w_in_aug, w_out_t, b_out_t = packed_params
        w_hid_t = b_hid_t = None

    d_in_aug, b_pad = xt.shape
    hidden = w_in_aug.shape[0]
    d_out = w_out_t.shape[0]

    assert chunk_b % 128 == 0 and tile_b % chunk_b == 0
    tile_b = max(chunk_b, min(tile_b, b_pad))
    assert b_pad % tile_b == 0, "prepared batch must be a multiple of the tile"

    args = [xt, w_in_aug]
    in_specs = [
        pl.BlockSpec((d_in_aug, tile_b), lambda i: (0, i)),     # streamed, double-buffered
        pl.BlockSpec((hidden, d_in_aug), lambda i: (0, 0)),     # resident
    ]
    if n_hidden > 0:
        args += [w_hid_t, b_hid_t]
        in_specs += [
            pl.BlockSpec((n_hidden, hidden, hidden), lambda i: (0, 0, 0)),  # resident
            pl.BlockSpec((n_hidden, hidden, 1), lambda i: (0, 0, 0)),       # resident
        ]
    args += [w_out_t, b_out_t]
    in_specs += [
        pl.BlockSpec((d_out, hidden), lambda i: (0, 0)),
        pl.BlockSpec((d_out, 1), lambda i: (0, 0)),
    ]

    flops = 2 * b_pad * (d_in_aug * hidden + n_hidden * hidden * hidden + hidden * d_out)
    transcendentals = b_pad * hidden * n_hidden_layers
    bytes_accessed = (sum(int(a.size) * a.dtype.itemsize for a in args)
                      + b_pad * d_out * jnp.dtype(out_dtype).itemsize)

    yt = pl.pallas_call(
        functools.partial(mlp_kernel, n_hidden=n_hidden, chunk_b=chunk_b,
                          act_dtype=activation_dtype),
        out_shape=jax.ShapeDtypeStruct((d_out, b_pad), out_dtype),
        grid=(b_pad // tile_b,),
        in_specs=in_specs,
        out_specs=pl.BlockSpec((d_out, tile_b), lambda i: (0, i)),
        compiler_params=pltpu.CompilerParams(
            dimension_semantics=("parallel",),        # shard batch across v7x's 2 TCs
            vmem_limit_bytes=32 * 1024 * 1024),       # explicit; safe on v7x's 64 MiB
        cost_estimate=pl.CostEstimate(
            flops=flops, transcendentals=transcendentals,
            bytes_accessed=bytes_accessed),
    )(*args)
    return yt


def neural_net_forward(x, w_in, b_in, w_hid, b_hid, w_out, b_out, *, n_hidden_layers,
                       tile_b=4096, chunk_b=512, matmul_dtype=jnp.bfloat16,
                       activation_dtype=None, out_dtype=jnp.float32):
    """Same semantics as NeuralNet.forward: x (B, D_in) f32 -> y (B, D_out).

    Weights are (in_features, out_features) (transpose of nn.Linear storage): y = x@W + b.
    Note: for maximum fidelity to the f32 PyTorch forward, pass matmul_dtype=jnp.float32
    (the MXU cost at these shapes is negligible); bf16 trades ~1e-2-level error for DMA /
    VPU throughput.
    """
    if activation_dtype is None:
        activation_dtype = default_activation_dtype()
    batch = x.shape[0]
    xt = prepare_inputs(x, tile_b=tile_b, chunk_b=chunk_b, matmul_dtype=matmul_dtype)
    packed = prepare_params(w_in, b_in, w_hid, b_hid, w_out, b_out,
                            n_hidden_layers=n_hidden_layers,
                            matmul_dtype=matmul_dtype,
                            activation_dtype=activation_dtype)
    yt = mlp_forward_prepared(xt, packed, n_hidden_layers=n_hidden_layers,
                              tile_b=tile_b, chunk_b=chunk_b,
                              activation_dtype=activation_dtype, out_dtype=out_dtype)
    return jnp.transpose(yt[:, :batch])


# ----------------------------- host-side helpers -----------------------------

def xavier_uniform(key, fan_in, fan_out, gain):
    # Matches torch.nn.init.xavier_uniform_ (gain = calculate_gain('tanh') = 5/3).
    a = gain * jnp.sqrt(6.0 / (fan_in + fan_out))
    return jax.random.uniform(key, (fan_in, fan_out), jnp.float32, -a, a)


def init_params(key, input_dim, output_dim, n_hidden_layers, neurons, bias_scale=0.0):
    # The module inits biases to 0; bias_scale>0 only for test coverage of the bias path.
    gain = 5.0 / 3.0
    keys = jax.random.split(key, 2 * (n_hidden_layers + 1))
    w_in = xavier_uniform(keys[0], input_dim, neurons, gain)
    b_in = bias_scale * jax.random.normal(keys[1], (1, neurons), jnp.float32)
    if n_hidden_layers > 1:
        w_hid = jnp.stack(
            [xavier_uniform(keys[2 + 2 * k], neurons, neurons, gain)
             for k in range(n_hidden_layers - 1)], axis=0)
        b_hid = bias_scale * jax.random.normal(
            keys[3], (n_hidden_layers - 1, 1, neurons), jnp.float32)
    else:
        w_hid = jnp.zeros((0, neurons, neurons), jnp.float32)
        b_hid = jnp.zeros((0, 1, neurons), jnp.float32)
    w_out = xavier_uniform(keys[-2], neurons, output_dim, gain)
    b_out = bias_scale * jax.random.normal(keys[-1], (1, output_dim), jnp.float32)
    return w_in, b_in, w_hid, b_hid, w_out, b_out


def reference_forward(x, w_in, b_in, w_hid, b_hid, w_out, b_out, n_hidden_layers,
                      matmul_dtype=jnp.float32, activation_dtype=jnp.float32):
    """Pure-JAX reference mirroring the kernel's dtype path (f32/f32 = PyTorch math)."""
    def mm(a, w):
        return jnp.dot(a.astype(matmul_dtype), w.astype(matmul_dtype),
                       preferred_element_type=jnp.float32)
    act = activation_dtype
    h = jnp.tanh((mm(x, w_in) + b_in.astype(matmul_dtype)).astype(act))
    for k in range(n_hidden_layers - 1):
        h = jnp.tanh(mm(h, w_hid[k]).astype(act) + b_hid[k].astype(act))
    return (mm(h, w_out) + b_out).astype(jnp.float32)


if __name__ == "__main__":
    # PINN-style NeuralNet: input_dimension=2 (x, t), output_dimension=1, 3 hidden layers,
    # 32 neurons.  batch=2000 with tile_b=1024 / chunk_b=512 exercises a multi-step grid,
    # the inner chunk loop, and the padded (non-multiple-of-tile) edge.
    batch, input_dim, output_dim = 2000, 2, 1
    n_hidden_layers, neurons = 3, 32
    tile_b, chunk_b = 1024, 512

    key = jax.random.PRNGKey(0)
    kx, kp = jax.random.split(key)
    x = jax.random.normal(kx, (batch, input_dim), jnp.float32)
    params = init_params(kp, input_dim, output_dim, n_hidden_layers, neurons,
                         bias_scale=0.1)

    act_dtype = default_activation_dtype()

    y = neural_net_forward(x, *params, n_hidden_layers=n_hidden_layers,
                           tile_b=tile_b, chunk_b=chunk_b)
    y = jax.block_until_ready(y)
    assert y.shape == (batch, output_dim)

    # Matched-dtype reference (same bf16 matmuls + same activation dtype path).
    y_matched = reference_forward(x, *params, n_hidden_layers=n_hidden_layers,
                                  matmul_dtype=jnp.bfloat16,
                                  activation_dtype=act_dtype)
    mtol = 5e-3 if act_dtype == jnp.float32 else 5e-2
    assert jnp.allclose(y, y_matched, atol=mtol, rtol=mtol), (
        "max |err| vs matched reference = "
        f"{float(jnp.max(jnp.abs(y - y_matched)))}")

    # Coarse fidelity check vs the full-f32 (PyTorch-equivalent) math.
    y_f32 = reference_forward(x, *params, n_hidden_layers=n_hidden_layers)
    ftol = 5e-2 if act_dtype == jnp.float32 else 2e-1
    assert jnp.allclose(y, y_f32, atol=ftol, rtol=ftol), (
        "max |err| vs f32 reference = "
        f"{float(jnp.max(jnp.abs(y - y_f32)))}")

    # Edge case: n_hidden_layers == 1 (no zero-sized operands reach pallas_call).
    params1 = init_params(kp, input_dim, output_dim, 1, neurons, bias_scale=0.1)
    y1 = jax.block_until_ready(
        neural_net_forward(x, *params1, n_hidden_layers=1,
                           tile_b=tile_b, chunk_b=chunk_b))
    y1_matched = reference_forward(x, *params1, n_hidden_layers=1,
                                   matmul_dtype=jnp.bfloat16,
                                   activation_dtype=act_dtype)
    assert jnp.allclose(y1, y1_matched, atol=mtol, rtol=mtol)

    print("KERNEL_OK")
</pallas_src>

<mosaic_0001>
module attributes {stable_mosaic.version = 11 : i64} {
  func.func @mlp_kernel(%arg0: i32, %arg1: memref<3x1024xbf16, #tpu.memory_space<vmem>>, %arg2: memref<32x3xbf16, #tpu.memory_space<vmem>>, %arg3: memref<2x32x32xbf16, #tpu.memory_space<vmem>>, %arg4: memref<2x32x1xf32, #tpu.memory_space<vmem>>, %arg5: memref<1x32xbf16, #tpu.memory_space<vmem>>, %arg6: memref<1x1xf32, #tpu.memory_space<vmem>>, %arg7: memref<1x1024xf32, #tpu.memory_space<vmem>>) attributes {dimension_semantics = [#tpu.dimension_semantics<parallel>], iteration_bounds = array<i64: 2>, scalar_prefetch = 0 : i64, scratch_operands = 0 : i64, tpu.core_type = #tpu.core_type<tc>, window_params = [{transform_indices = @transform_0, window_bounds = array<i64: 3, 1024>}, {pipeline_mode = #tpu.pipeline_mode<synchronous>, transform_indices = @transform_1, window_bounds = array<i64: 32, 3>}, {pipeline_mode = #tpu.pipeline_mode<synchronous>, transform_indices = @transform_2, window_bounds = array<i64: 2, 32, 32>}, {pipeline_mode = #tpu.pipeline_mode<synchronous>, transform_indices = @transform_3, window_bounds = array<i64: 2, 32, 1>}, {pipeline_mode = #tpu.pipeline_mode<synchronous>, transform_indices = @transform_4, window_bounds = array<i64: 1, 32>}, {pipeline_mode = #tpu.pipeline_mode<synchronous>, transform_indices = @transform_5, window_bounds = array<i64: 1, 1>}, {transform_indices = @transform_6, window_bounds = array<i64: 1, 1024>}]} {
    %c0_i32 = arith.constant 0 : i32
    %c512_i32 = arith.constant 512 : i32
    %0 = arith.muli %c0_i32, %c512_i32 : i32
    %1 = tpu.assume_multiple %0, 512 : i32
    %c0 = arith.constant 0 : index
    %2 = arith.index_cast %1 : i32 to index
    %3 = vector.load %arg1[%c0, %2] : memref<3x1024xbf16, #tpu.memory_space<vmem>>, vector<3x512xbf16>
    %c0_0 = arith.constant 0 : index
    %c0_1 = arith.constant 0 : index
    %4 = vector.load %arg2[%c0_0, %c0_1] : memref<32x3xbf16, #tpu.memory_space<vmem>>, vector<32x3xbf16>
    %cst = arith.constant dense<0.000000e+00> : vector<32x512xf32>
    %5 = tpu.matmul %4, %3, %cst {dimension_numbers = #tpu.dot_dimension_numbers<[1], [0], [0], [1], [0, 0, 1, 1], [], []>} : vector<32x3xbf16>, vector<3x512xbf16>, vector<32x512xf32> -> vector<32x512xf32>
    %6 = math.tanh %5 : vector<32x512xf32>
    %c0_2 = arith.constant 0 : index
    %c0_3 = arith.constant 0 : index
    %c0_4 = arith.constant 0 : index
    %7 = vector.load %arg3[%c0_2, %c0_3, %c0_4] : memref<2x32x32xbf16, #tpu.memory_space<vmem>>, vector<1x32x32xbf16>
    %8 = vector.shape_cast %7 : vector<1x32x32xbf16> to vector<32x32xbf16>
    %9 = arith.truncf %6 : vector<32x512xf32> to vector<32x512xbf16>
    %cst_5 = arith.constant dense<0.000000e+00> : vector<32x512xf32>
    %10 = tpu.matmul %8, %9, %cst_5 {dimension_numbers = #tpu.dot_dimension_numbers<[1], [0], [0], [1], [0, 0, 1, 1], [], []>} : vector<32x32xbf16>, vector<32x512xbf16>, vector<32x512xf32> -> vector<32x512xf32>
    %c0_6 = arith.constant 0 : index
    %c0_7 = arith.constant 0 : index
    %c0_8 = arith.constant 0 : index
    %11 = vector.load %arg4[%c0_6, %c0_7, %c0_8] : memref<2x32x1xf32, #tpu.memory_space<vmem>>, vector<1x32x1xf32>
    %12 = vector.shape_cast %11 : vector<1x32x1xf32> to vector<32x1xf32>
    %13 = vector.broadcast %12 : vector<32x1xf32> to vector<32x512xf32>
    %14 = arith.addf %10, %13 : vector<32x512xf32>
    %15 = math.tanh %14 : vector<32x512xf32>
    %c1 = arith.constant 1 : index
    %c0_9 = arith.constant 0 : index
    %c0_10 = arith.constant 0 : index
    %16 = vector.load %arg3[%c1, %c0_9, %c0_10] : memref<2x32x32xbf16, #tpu.memory_space<vmem>>, vector<1x32x32xbf16>
    %17 = vector.shape_cast %16 : vector<1x32x32xbf16> to vector<32x32xbf16>
    %18 = arith.truncf %15 : vector<32x512xf32> to vector<32x512xbf16>
    %cst_11 = arith.constant dense<0.000000e+00> : vector<32x512xf32>
    %19 = tpu.matmul %17, %18, %cst_11 {dimension_numbers = #tpu.dot_dimension_numbers<[1], [0], [0], [1], [0, 0, 1, 1], [], []>} : vector<32x32xbf16>, vector<32x512xbf16>, vector<32x512xf32> -> vector<32x512xf32>
    %c1_12 = arith.constant 1 : index
    %c0_13 = arith.constant 0 : index
    %c0_14 = arith.constant 0 : index
    %20 = vector.load %arg4[%c1_12, %c0_13, %c0_14] : memref<2x32x1xf32, #tpu.memory_space<vmem>>, vector<1x32x1xf32>
    %21 = vector.shape_cast %20 : vector<1x32x1xf32> to vector<32x1xf32>
    %22 = vector.broadcast %21 : vector<32x1xf32> to vector<32x512xf32>
    %23 = arith.addf %19, %22 : vector<32x512xf32>
    %24 = math.tanh %23 : vector<32x512xf32>
    %c0_15 = arith.constant 0 : index
    %c0_16 = arith.constant 0 : index
    %25 = vector.load %arg5[%c0_15, %c0_16] : memref<1x32xbf16, #tpu.memory_space<vmem>>, vector<1x32xbf16>
    %26 = arith.truncf %24 : vector<32x512xf32> to vector<32x512xbf16>
    %cst_17 = arith.constant dense<0.000000e+00> : vector<1x512xf32>
    %27 = tpu.matmul %25, %26, %cst_17 {dimension_numbers = #tpu.dot_dimension_numbers<[1], [0], [0], [1], [0, 0, 1, 1], [], []>} : vector<1x32xbf16>, vector<32x512xbf16>, vector<1x512xf32> -> vector<1x512xf32>
    %c0_18 = arith.constant 0 : index
    %c0_19 = arith.constant 0 : index
    %28 = vector.load %arg6[%c0_18, %c0_19] : memref<1x1xf32, #tpu.memory_space<vmem>>, vector<1x1xf32>
    %29 = vector.broadcast %28 : vector<1x1xf32> to vector<1x512xf32>
    %30 = arith.addf %27, %29 : vector<1x512xf32>
    %c0_20 = arith.constant 0 : index
    %31 = arith.index_cast %1 : i32 to index
    %32 = vector.load %arg7[%c0_20, %31] : memref<1x1024xf32, #tpu.memory_space<vmem>>, vector<1x512xf32>
    tpu.vector_store %arg7[%c0_20, %31], %30 {strides = array<i32>} : memref<1x1024xf32, #tpu.memory_space<vmem>>, vector<1x512xf32>,
    %c1_i32 = arith.constant 1 : i32
    %c512_i32_21 = arith.constant 512 : i32
    %33 = arith.muli %c1_i32, %c512_i32_21 : i32
    %34 = tpu.assume_multiple %33, 512 : i32
    %c0_22 = arith.constant 0 : index
    %35 = arith.index_cast %34 : i32 to index
    %36 = vector.load %arg1[%c0_22, %35] : memref<3x1024xbf16, #tpu.memory_space<vmem>>, vector<3x512xbf16>
    %c0_23 = arith.constant 0 : index
    %c0_24 = arith.constant 0 : index
    %37 = vector.load %arg2[%c0_23, %c0_24] : memref<32x3xbf16, #tpu.memory_space<vmem>>, vector<32x3xbf16>
    %cst_25 = arith.constant dense<0.000000e+00> : vector<32x512xf32>
    %38 = tpu.matmul %37, %36, %cst_25 {dimension_numbers = #tpu.dot_dimension_numbers<[1], [0], [0], [1], [0, 0, 1, 1], [], []>} : vector<32x3xbf16>, vector<3x512xbf16>, vector<32x512xf32> -> vector<32x512xf32>
    %39 = math.tanh %38 : vector<32x512xf32>
    %c0_26 = arith.constant 0 : index
    %c0_27 = arith.constant 0 : index
    %c0_28 = arith.constant 0 : index
    %40 = vector.load %arg3[%c0_26, %c0_27, %c0_28] : memref<2x32x32xbf16, #tpu.memory_space<vmem>>, vector<1x32x32xbf16>
    %41 = vector.shape_cast %40 : vector<1x32x32xbf16> to vector<32x32xbf16>
    %42 = arith.truncf %39 : vector<32x512xf32> to vector<32x512xbf16>
    %cst_29 = arith.constant dense<0.000000e+00> : vector<32x512xf32>
    %43 = tpu.matmul %41, %42, %cst_29 {dimension_numbers = #tpu.dot_dimension_numbers<[1], [0], [0], [1], [0, 0, 1, 1], [], []>} : vector<32x32xbf16>, vector<32x512xbf16>, vector<32x512xf32> -> vector<32x512xf32>
    %c0_30 = arith.constant 0 : index
    %c0_31 = arith.constant 0 : index
    %c0_32 = arith.constant 0 : index
    %44 = vector.load %arg4[%c0_30, %c0_31, %c0_32] : memref<2x32x1xf32, #tpu.memory_space<vmem>>, vector<1x32x1xf32>
    %45 = vector.shape_cast %44 : vector<1x32x1xf32> to vector<32x1xf32>
    %46 = vector.broadcast %45 : vector<32x1xf32> to vector<32x512xf32>
    %47 = arith.addf %43, %46 : vector<32x512xf32>
    %48 = math.tanh %47 : vector<32x512xf32>
    %c1_33 = arith.constant 1 : index
    %c0_34 = arith.constant 0 : index
    %c0_35 = arith.constant 0 : index
    %49 = vector.load %arg3[%c1_33, %c0_34, %c0_35] : memref<2x32x32xbf16, #tpu.memory_space<vmem>>, vector<1x32x32xbf16>
    %50 = vector.shape_cast %49 : vector<1x32x32xbf16> to vector<32x32xbf16>
    %51 = arith.truncf %48 : vector<32x512xf32> to vector<32x512xbf16>
    %cst_36 = arith.constant dense<0.000000e+00> : vector<32x512xf32>
    %52 = tpu.matmul %50, %51, %cst_36 {dimension_numbers = #tpu.dot_dimension_numbers<[1], [0], [0], [1], [0, 0, 1, 1], [], []>} : vector<32x32xbf16>, vector<32x512xbf16>, vector<32x512xf32> -> vector<32x512xf32>
    %c1_37 = arith.constant 1 : index
    %c0_38 = arith.constant 0 : index
    %c0_39 = arith.constant 0 : index
    %53 = vector.load %arg4[%c1_37, %c0_38, %c0_39] : memref<2x32x1xf32, #tpu.memory_space<vmem>>, vector<1x32x1xf32>
    %54 = vector.shape_cast %53 : vector<1x32x1xf32> to vector<32x1xf32>
    %55 = vector.broadcast %54 : vector<32x1xf32> to vector<32x512xf32>
    %56 = arith.addf %52, %55 : vector<32x512xf32>
    %57 = math.tanh %56 : vector<32x512xf32>
    %c0_40 = arith.constant 0 : index
    %c0_41 = arith.constant 0 : index
    %58 = vector.load %arg5[%c0_40, %c0_41] : memref<1x32xbf16, #tpu.memory_space<vmem>>, vector<1x32xbf16>
    %59 = arith.truncf %57 : vector<32x512xf32> to vector<32x512xbf16>
    %cst_42 = arith.constant dense<0.000000e+00> : vector<1x512xf32>
    %60 = tpu.matmul %58, %59, %cst_42 {dimension_numbers = #tpu.dot_dimension_numbers<[1], [0], [0], [1], [0, 0, 1, 1], [], []>} : vector<1x32xbf16>, vector<32x512xbf16>, vector<1x512xf32> -> vector<1x512xf32>
    %c0_43 = arith.constant 0 : index
    %c0_44 = arith.constant 0 : index
    %61 = vector.load %arg6[%c0_43, %c0_44] : memref<1x1xf32, #tpu.memory_space<vmem>>, vector<1x1xf32>
    %62 = vector.broadcast %61 : vector<1x1xf32> to vector<1x512xf32>
    %63 = arith.addf %60, %62 : vector<1x512xf32>
    %c0_45 = arith.constant 0 : index
    %64 = arith.index_cast %34 : i32 to index
    %65 = vector.load %arg7[%c0_45, %64] : memref<1x1024xf32, #tpu.memory_space<vmem>>, vector<1x512xf32>
    tpu.vector_store %arg7[%c0_45, %64], %63 {strides = array<i32>} : memref<1x1024xf32, #tpu.memory_space<vmem>>, vector<1x512xf32>,
    %c2_i32 = arith.constant 2 : i32
    return
  }
  func.func @transform_0(%arg0: i32) -> (i32, i32) {
    %c0_i32 = arith.constant 0 : i32
    %c0_i32_0 = arith.constant 0 : i32
    return %c0_i32, %arg0 : i32, i32
  }
  func.func @transform_1(%arg0: i32) -> (i32, i32) {
    %c0_i32 = arith.constant 0 : i32
    %c0_i32_0 = arith.constant 0 : i32
    %c0_i32_1 = arith.constant 0 : i32
    return %c0_i32, %c0_i32_0 : i32, i32
  }
  func.func @transform_2(%arg0: i32) -> (i32, i32, i32) {
    %c0_i32 = arith.constant 0 : i32
    %c0_i32_0 = arith.constant 0 : i32
    %c0_i32_1 = arith.constant 0 : i32
    %c0_i32_2 = arith.constant 0 : i32
    return %c0_i32, %c0_i32_0, %c0_i32_1 : i32, i32, i32
  }
  func.func @transform_3(%arg0: i32) -> (i32, i32, i32) {
    %c0_i32 = arith.constant 0 : i32
    %c0_i32_0 = arith.constant 0 : i32
    %c0_i32_1 = arith.constant 0 : i32
    %c0_i32_2 = arith.constant 0 : i32
    return %c0_i32, %c0_i32_0, %c0_i32_1 : i32, i32, i32
  }
  func.func @transform_4(%arg0: i32) -> (i32, i32) {
    %c0_i32 = arith.constant 0 : i32
    %c0_i32_0 = arith.constant 0 : i32
    %c0_i32_1 = arith.constant 0 : i32
    return %c0_i32, %c0_i32_0 : i32, i32
  }
  func.func @transform_5(%arg0: i32) -> (i32, i32) {
    %c0_i32 = arith.constant 0 : i32
    %c0_i32_0 = arith.constant 0 : i32
    %c0_i32_1 = arith.constant 0 : i32
    return %c0_i32, %c0_i32_0 : i32, i32
  }
  func.func @transform_6(%arg0: i32) -> (i32, i32) {
    %c0_i32 = arith.constant 0 : i32
    %c0_i32_0 = arith.constant 0 : i32
    return %c0_i32, %arg0 : i32, i32
  }
}

</mosaic_0001>

<llo_original>
// kernel: tpu_custom_call.1
$region0: #{tpu_custom_call.1}
  #allocation0 [shape = 'u32[]', space=smem, size = 0x4, offset = 0x4, fixed_abs, tag = 'smem constant byte address 0x4 - core index']
  #allocation1 [shape = 'u32[72,128]{1,0:T(1,128)}', space=vmem, size = 0x9000, scoped, tag = 'internal scratch']
  #allocation2 [shape = 'f32[1,1]{1,0:T(1,128)S(1)}', space=vmem, size = 0x200, scoped, tag = 'scoped memory for tpu_custom_call.1']
  %s0 = inlined_call_operand.vmem [shape: bf16[3,2048], index: 0, kind: input, shape index: {}]
  %s1 = inlined_call_operand.vmem [shape: bf16[32,3], index: 1, kind: input, shape index: {}]
  %s2 = inlined_call_operand.vmem [shape: bf16[2,32,32], index: 2, kind: input, shape index: {}]
  %s3 = inlined_call_operand.vmem [shape: f32[2,32,1], index: 3, kind: input, shape index: {}]
  %s4 = inlined_call_operand.vmem [shape: bf16[1,32], index: 4, kind: input, shape index: {}]
  %s5 = inlined_call_operand.<no memory space> [shape: f32[1,1], index: 5, kind: input, shape index: {}]
  %s6 = inlined_call_operand.hbm [shape: f32[1,2048], index: 6, kind: output, shape index: {}]
  %s7 = sld [smem:[#allocation0]]
  $region57: #{tpu_custom_call.1} parent=0
    _
  %s9 = ssub.s32 1, %s7
  %s10 = scalar_select 0, %s9, %s7
  %v11 = vstv %s5
  %12 = vst [vmem:[#allocation2] sm:$0x1] %v11
  $region1: #{tpu_custom_call.1} parent=0
    #allocation3 [shape = 'u8[8192]{0}', space=vmem, size = 0x2000, scoped, tag = 'output window, operand 0']
    #allocation4 [shape = 's32[2]{0}', space=sflag, size = 0x8, scoped, tag = 'scoped memory for tpu_custom_call.1']
    %13 = vsyncpa [#allocation4], 0
    %s14 = scalar_lea.sflag [#allocation4], 1
    %15 = vsyncpa %s14, 0
    loop: start=0, step=1, limit=4
    $region2: #{tpu_custom_call.1} parent=1 // loop_pre_header
      _
    $region3: #{tpu_custom_call.1} parent=1 // loop_header
      %s17 = sphi 0, %s21
      %p18 = scmp.ge.s32.totalorder %s17, 4
      %s27 = sphi 0, %s29
      %s30 = sphi 0, %s27
      %s31 = sphi 0, %s30
      %s47 = sphi 0, %s31
      %s51 = sphi 0, %s51
      %s53 = sphi 0, %s51
      %s54 = sphi 0, %s53
      %s68 = sphi 0, %s54
      %s72 = sphi 0, %s72
      %s74 = sphi 0, %s72
      %s75 = sphi 0, %s74
      %s89 = sphi 0, %s75
      %s93 = sphi 0, %s93
      %s95 = sphi 0, %s93
      %s96 = sphi 0, %s95
      %s110 = sphi 0, %s96
      %s114 = sphi 0, %s114
      %s116 = sphi 0, %s114
      %s117 = sphi 0, %s116
      %s131 = sphi 0, %s117
      %s135 = sphi 0, %s135
      %s137 = sphi 0, %s135
      %s138 = sphi 0, %s137
      %s152 = sphi 0, %s138
      %s158 = sphi 0, %s160
      %s161 = sphi 0, %s158
      %s162 = sphi 0, %s161
      %s178 = sphi 0, %s162
    $region4: #{tpu_custom_call.1} parent=1 // loop_header_branch
      %20 = sbr.rel (%p18) target = $region8
    $region5: #{tpu_custom_call.1} parent=1 // loop_body
      %s22 = ssub.s32 %s17, 1
      %s23 = ssub.s32 %s17, 2
      %s24 = sadd.s32 %s17, 1
      %s25 = ssub.s32 %s17, %s24
      %p26 = scmp.eq.s32.totalorder %s25, 0
      %s28 = sadd.s32 %s27, 1
      %s29 = scalar_select %p26, %s27, %s28
      %p32 = pneg %p26
      %p33 = scmp.eq.s32.totalorder %s17, 1
      %p34 = por %p32, %p33
      %p35 = scmp.ne.s32.totalorder %s27, %s30
      %p36 = scmp.eq.s32.totalorder %s17, 0
      %p37 = por %p35, %p36
      %p38 = scmp.ne.s32.totalorder %s27, %s30
      %p39 = scmp.eq.s32.totalorder %s22, 1
      %p40 = por %p38, %p39
      %p41 = scmp.ne.s32.totalorder %s30, %s31
      %p42 = scmp.eq.s32.totalorder %s22, 0
      %p43 = por %p41, %p42
      %p44 = scmp.ne.s32.totalorder %s30, %s31
      %p45 = scmp.eq.s32.totalorder %s23, 1
      %p46 = por %p44, %p45
      %p48 = scmp.ne.s32.totalorder %s31, %s47
      %p49 = scmp.eq.s32.totalorder %s23, 0
      %p50 = por %p48, %p49
      %s52 = sadd.s32 %s51, 1
      %p55 = scmp.eq.s32.totalorder %s17, 1
      %p56 = scmp.ne.s32.totalorder %s51, %s53
      %p57 = scmp.eq.s32.totalorder %s17, 0
      %p58 = por %p56, %p57
      %p59 = scmp.ne.s32.totalorder %s51, %s53
      %p60 = scmp.eq.s32.totalorder %s22, 1
      %p61 = por %p59, %p60
      %p62 = scmp.ne.s32.totalorder %s53, %s54
      %p63 = scmp.eq.s32.totalorder %s22, 0
      %p64 = por %p62, %p63
      %p65 = scmp.ne.s32.totalorder %s53, %s54
      %p66 = scmp.eq.s32.totalorder %s23, 1
      %p67 = por %p65, %p66
      %p69 = scmp.ne.s32.totalorder %s54, %s68
      %p70 = scmp.eq.s32.totalorder %s23, 0
      %p71 = por %p69, %p70
      %s73 = sadd.s32 %s72, 1
      %p76 = scmp.eq.s32.totalorder %s17, 1
      %p77 = scmp.ne.s32.totalorder %s72, %s74
      %p78 = scmp.eq.s32.totalorder %s17, 0
      %p79 = por %p77, %p78
      %p80 = scmp.ne.s32.totalorder %s72, %s74
      %p81 = scmp.eq.s32.totalorder %s22, 1
      %p82 = por %p80, %p81
      %p83 = scmp.ne.s32.totalorder %s74, %s75
      %p84 = scmp.eq.s32.totalorder %s22, 0
      %p85 = por %p83, %p84
      %p86 = scmp.ne.s32.totalorder %s74, %s75
      %p87 = scmp.eq.s32.totalorder %s23, 1
      %p88 = por %p86, %p87
      %p90 = scmp.ne.s32.totalorder %s75, %s89
      %p91 = scmp.eq.s32.totalorder %s23, 0
      %p92 = por %p90, %p91
      %s94 = sadd.s32 %s93, 1
      %p97 = scmp.eq.s32.totalorder %s17, 1
      %p98 = scmp.ne.s32.totalorder %s93, %s95
      %p99 = scmp.eq.s32.totalorder %s17, 0
      %p100 = por %p98, %p99
      %p101 = scmp.ne.s32.totalorder %s93, %s95
      %p102 = scmp.eq.s32.totalorder %s22, 1
      %p103 = por %p101, %p102
      %p104 = scmp.ne.s32.totalorder %s95, %s96
      %p105 = scmp.eq.s32.totalorder %s22, 0
      %p106 = por %p104, %p105
      %p107 = scmp.ne.s32.totalorder %s95, %s96
      %p108 = scmp.eq.s32.totalorder %s23, 1
      %p109 = por %p107, %p108
      %p111 = scmp.ne.s32.totalorder %s96, %s110
      %p112 = scmp.eq.s32.totalorder %s23, 0
      %p113 = por %p111, %p112
      %s115 = sadd.s32 %s114, 1
      %p118 = scmp.eq.s32.totalorder %s17, 1
      %p119 = scmp.ne.s32.totalorder %s114, %s116
      %p120 = scmp.eq.s32.totalorder %s17, 0
      %p121 = por %p119, %p120
      %p122 = scmp.ne.s32.totalorder %s114, %s116
      %p123 = scmp.eq.s32.totalorder %s22, 1
      %p124 = por %p122, %p123
      %p125 = scmp.ne.s32.totalorder %s116, %s117
      %p126 = scmp.eq.s32.totalorder %s22, 0
      %p127 = por %p125, %p126
      %p128 = scmp.ne.s32.totalorder %s116, %s117
      %p129 = scmp.eq.s32.totalorder %s23, 1
      %p130 = por %p128, %p129
      %p132 = scmp.ne.s32.totalorder %s117, %s131
      %p133 = scmp.eq.s32.totalorder %s23, 0
      %p134 = por %p132, %p133
      %s136 = sadd.s32 %s135, 1
      %p139 = scmp.eq.s32.totalorder %s17, 1
      %p140 = scmp.ne.s32.totalorder %s135, %s137
      %p141 = scmp.eq.s32.totalorder %s17, 0
      %p142 = por %p140, %p141
      %p143 = scmp.ne.s32.totalorder %s135, %s137
      %p144 = scmp.eq.s32.totalorder %s22, 1
      %p145 = por %p143, %p144
      %p146 = scmp.ne.s32.totalorder %s137, %s138
      %p147 = scmp.eq.s32.totalorder %s22, 0
      %p148 = por %p146, %p147
      %p149 = scmp.ne.s32.totalorder %s137, %s138
      %p150 = scmp.eq.s32.totalorder %s23, 1
      %p151 = por %p149, %p150
      %p153 = scmp.ne.s32.totalorder %s138, %s152
      %p154 = scmp.eq.s32.totalorder %s23, 0
      %p155 = por %p153, %p154
      %s156 = ssub.s32 %s17, %s24
      %p157 = scmp.eq.s32.totalorder %s156, 0
      %s159 = sadd.s32 %s158, 1
      %s160 = scalar_select %p157, %s158, %s159
      %p163 = pneg %p157
      %p164 = scmp.eq.s32.totalorder %s17, 1
      %p165 = por %p163, %p164
      %p166 = scmp.ne.s32.totalorder %s158, %s161
      %p167 = scmp.eq.s32.totalorder %s17, 0
      %p168 = por %p166, %p167
      %p169 = scmp.ne.s32.totalorder %s158, %s161
      %p170 = scmp.eq.s32.totalorder %s22, 1
      %p171 = por %p169, %p170
      %p172 = scmp.ne.s32.totalorder %s161, %s162
      %p173 = scmp.eq.s32.totalorder %s22, 0
      %p174 = por %p172, %p173
      %p175 = scmp.ne.s32.totalorder %s161, %s162
      %p176 = scmp.eq.s32.totalorder %s23, 1
      %p177 = por %p175, %p176
      %p179 = scmp.ne.s32.totalorder %s162, %s178
      %p180 = scmp.eq.s32.totalorder %s23, 0
      %p181 = por %p179, %p180
      %p182 = scmp.le.s32.totalorder 1, %s17
      %p183 = scmp.lt.s32.totalorder %s17, 3
      %p184 = pnand %p182, %p183
      %p185 = pneg %p184
      // Predicated region
      $region9: #{tpu_custom_call.1} parent=5 // pred_check
        _
      $region10: #{tpu_custom_call.1} parent=5 // pred_check_branch
        %187 = sbr.rel (%p184) target = $region12
      $region11: #{tpu_custom_call.1} parent=5 // pred_region
        %s188 = ssub.s32 %s17, 1
        // Predicated region
        $region13: #{tpu_custom_call.1} parent=11 // pred_check
          %p189 = pneg %p64
        $region14: #{tpu_custom_call.1} parent=11 // pred_check_branch
          %191 = sbr.rel (%p189) target = $region16
        $region15: #{tpu_custom_call.1} parent=11 // pred_region
          _
        $region16: #{tpu_custom_call.1} parent=11 // pred_fallthru
          _
        // Predicated region
        $region17: #{tpu_custom_call.1} parent=11 // pred_check
          %p192 = pneg %p85
        $region18: #{tpu_custom_call.1} parent=11 // pred_check_branch
          %194 = sbr.rel (%p192) target = $region20
        $region19: #{tpu_custom_call.1} parent=11 // pred_region
          _
        $region20: #{tpu_custom_call.1} parent=11 // pred_fallthru
          _
        // Predicated region
        $region21: #{tpu_custom_call.1} parent=11 // pred_check
          %p195 = pneg %p106
        $region22: #{tpu_custom_call.1} parent=11 // pred_check_branch
          %197 = sbr.rel (%p195) target = $region24
        $region23: #{tpu_custom_call.1} parent=11 // pred_region
          _
        $region24: #{tpu_custom_call.1} parent=11 // pred_fallthru
          _
        // Predicated region
        $region25: #{tpu_custom_call.1} parent=11 // pred_check
          %p198 = pneg %p127
        $region26: #{tpu_custom_call.1} parent=11 // pred_check_branch
          %200 = sbr.rel (%p198) target = $region28
        $region27: #{tpu_custom_call.1} parent=11 // pred_region
          _
        $region28: #{tpu_custom_call.1} parent=11 // pred_fallthru
          _
        // Predicated region
        $region29: #{tpu_custom_call.1} parent=11 // pred_check
          %p201 = pneg %p148
        $region30: #{tpu_custom_call.1} parent=11 // pred_check_branch
          %203 = sbr.rel (%p201) target = $region32
        $region31: #{tpu_custom_call.1} parent=11 // pred_region
          _
        $region32: #{tpu_custom_call.1} parent=11 // pred_fallthru
          _
      $region12: #{tpu_custom_call.1} parent=5 // pred_fallthru
        _
      %p204 = scmp.lt.s32.totalorder %s17, 2
      // Predicated region
      $region33: #{tpu_custom_call.1} parent=5 // pred_check
        %p205 = pneg %p204
      $region34: #{tpu_custom_call.1} parent=5 // pred_check_branch
        %207 = sbr.rel (%p205) target = $region36
      $region35: #{tpu_custom_call.1} parent=5 // pred_region
        // Predicated region
        $region37: #{tpu_custom_call.1} parent=35 // pred_check
          %p208 = pneg %p37
        $region38: #{tpu_custom_call.1} parent=35 // pred_check_branch
          %210 = sbr.rel (%p208) target = $region40
        $region39: #{tpu_custom_call.1} parent=35 // pred_region
          %s211 = smul.u32 8, %s17
          %p212 = scmp.lt.s32.totalorder %s211, 15
          %s213 = scalar_select %p212, %s211, 15
          %s214 = smul.addr %s213, 2
          %s215 = scalar_lea.vmem %s0, %s214
          %s216 = smul.u32 8, %s17
        $region40: #{tpu_custom_call.1} parent=35 // pred_fallthru
          _
      $region36: #{tpu_custom_call.1} parent=5 // pred_fallthru
        _
      %p217 = scmp.le.s32.totalorder 1, %s17
      %p218 = scmp.lt.s32.totalorder %s17, 3
      %p219 = pnand %p217, %p218
      %p220 = pneg %p219
      // Predicated region
      $region41: #{tpu_custom_call.1} parent=5 // pred_check
        _
      $region42: #{tpu_custom_call.1} parent=5 // pred_check_branch
        %222 = sbr.rel (%p219) target = $region44
      $region43: #{tpu_custom_call.1} parent=5 // pred_region
        %s223 = ssub.s32 %s17, 1
        %s224 = smul.u32 8, %s22
        %p225 = scmp.lt.s32.totalorder %s224, 15
        %s226 = scalar_select %p225, %s224, 15
        %s227 = smul.addr %s226, 2
        %s228 = scalar_lea.vmem %s0, %s227
        %p229 = pneg %p43
        %p230 = pneg %p40
        %p231 = pneg %p64
        %p232 = pneg %p61
        %p233 = pneg %p85
        %p234 = pneg %p82
        %p235 = pneg %p106
        %p236 = pneg %p103
        %p237 = pneg %p127
        %p238 = pneg %p124
        %p239 = pneg %p148
        %p240 = pneg %p145
        %p241 = pneg %p174
        %p242 = pneg %p171
        %s243 = sand.u32 %s161, 1
        %s244 = scalar_lea.sflag [#allocation4], %s243
        %s245 = sand.u32 %s161, 1
        %s246 = smul.addr %s245, 8
        %s247 = scalar_lea.vmem [#allocation3], %s246
        %s248 = smul.u32 8, %s22
        %p249 = scmp.lt.s32.totalorder %s248, 15
        %s250 = scalar_select %p249, %s248, 15
        %s251 = smul.addr %s250, 2
        %s252 = scalar_lea.vmem %s0, %s251
        %s253 = smul.u32 8, %s22
        %s254 = smul.u32 8, %s22
        %v256 = vld [vmem:[%s252] sm:$0xff]
        %v257 = vld [vmem:[%s1] sm:$0xf]
        %v258 = vld [vmem:[%s1 + $0x4] sm:$0xf]
        %v259 = vld [vmem:[%s1 + $0x8] sm:$0xf]
        %v260 = vld [vmem:[%s1 + $0xc] sm:$0xf]
        %v265 = vunpack.c.l.b16 %v257
        %v266 = vunpack.c.l.b16 %v258
        %v267 = vunpack.c.l.b16 %v259
        %v268 = vunpack.c.l.b16 %v260
        %v269 = vpack.c.b16 %v266, %v265
        %v270 = vpack.c.b16 %v268, %v267
        %272 = vst [vmem:[#allocation1] ss:$4 sm:$0xff] %v256
        %v273 = vld.sshfl [vmem:[#allocation1] sm:$0xff pattern:$0x73625140]
        %v274 = vld.sshfl [vmem:[#allocation1 + $0x8] sm:$0xff pattern:$0x73625140]
        %v275 = vld.sshfl [vmem:[#allocation1 + $0x10] sm:$0xff pattern:$0x73625140]
        %v276 = vld.sshfl [vmem:[#allocation1 + $0x18] sm:$0xff pattern:$0x73625140]
        %vm277 = vcmask 23552
        %v279 = vsel %vm277, %v269, 0
        %v282 = vsel %vm277, %v270, 0
        %vm284 = vcmask 1040384
        %vm285 = vcmask 1041408
        %v286 = vsel %vm284, 4294967295, 65535
        %v287 = vsel %vm285, %v286, 0
        %v288 = vand.u32 %v273, %v287
        %v290 = vand.u32 %v274, %v287
        %v292 = vand.u32 %v275, %v287
        %v294 = vand.u32 %v276, %v287
        %296 = vmatpush.bf16.msra.mxu0 0
        %297 = vmatpush.bf16.msra.mxu0 0
        %298 = vmatpush.bf16.msra.mxu0 0
        %299 = vmatpush.bf16.msra.mxu0 0
        %300 = vmatpush.bf16.msra.mxu0 0
        %301 = vmatpush.bf16.msra.mxu0 0
        %302 = vmatpush.bf16.msra.mxu0 0
        %303 = vmatpush.bf16.msra.mxu0 %v288
        %304 = vmatmul.bf16.gmra.mxu0 %v279
        %v305 = vpop.f32.mrf.mxu0
        %v306 = vadd.f32 0.0, %v305
        %v307 = vpop.f32.mrf.mxu0
        %v308 = vadd.f32 0.0, %v307
        %309 = vmatmul.bf16.gmra.mxu0 %v282
        %v310 = vpop.f32.mrf.mxu0
        %v311 = vadd.f32 0.0, %v310
        %v312 = vpop.f32.mrf.mxu0
        %v313 = vadd.f32 0.0, %v312
        %314 = vdwg.mxu0
        %315 = vmatpush.bf16.msra.mxu0 0
        %316 = vmatpush.bf16.msra.mxu0 0
        %317 = vmatpush.bf16.msra.mxu0 0
        %318 = vmatpush.bf16.msra.mxu0 0
        %319 = vmatpush.bf16.msra.mxu0 0
        %320 = vmatpush.bf16.msra.mxu0 0
        %321 = vmatpush.bf16.msra.mxu0 0
        %322 = vmatpush.bf16.msra.mxu0 %v290
        %323 = vmatmul.bf16.gmra.mxu0 %v279
        %v324 = vpop.f32.mrf.mxu0
        %v325 = vadd.f32 0.0, %v324
        %v326 = vpop.f32.mrf.mxu0
        %v327 = vadd.f32 0.0, %v326
        %328 = vmatmul.bf16.gmra.mxu0 %v282
        %v329 = vpop.f32.mrf.mxu0
        %v330 = vadd.f32 0.0, %v329
        %v331 = vpop.f32.mrf.mxu0
        %v332 = vadd.f32 0.0, %v331
        %333 = vdwg.mxu0
        %334 = vmatpush.bf16.msra.mxu0 0
        %335 = vmatpush.bf16.msra.mxu0 0
        %336 = vmatpush.bf16.msra.mxu0 0
        %337 = vmatpush.bf16.msra.mxu0 0
        %338 = vmatpush.bf16.msra.mxu0 0
        %339 = vmatpush.bf16.msra.mxu0 0
        %340 = vmatpush.bf16.msra.mxu0 0
        %341 = vmatpush.bf16.msra.mxu0 %v292
        %342 = vmatmul.bf16.gmra.mxu0 %v279
        %v343 = vpop.f32.mrf.mxu0
        %v344 = vadd.f32 0.0, %v343
        %v345 = vpop.f32.mrf.mxu0
        %v346 = vadd.f32 0.0, %v345
        %347 = vmatmul.bf16.gmra.mxu0 %v282
        %v348 = vpop.f32.mrf.mxu0
        %v349 = vadd.f32 0.0, %v348
        %v350 = vpop.f32.mrf.mxu0
        %v351 = vadd.f32 0.0, %v350
        %352 = vdwg.mxu0
        %353 = vmatpush.bf16.msra.mxu0 0
        %354 = vmatpush.bf16.msra.mxu0 0
        %355 = vmatpush.bf16.msra.mxu0 0
        %356 = vmatpush.bf16.msra.mxu0 0
        %357 = vmatpush.bf16.msra.mxu0 0
        %358 = vmatpush.bf16.msra.mxu0 0
        %359 = vmatpush.bf16.msra.mxu0 0
        %360 = vmatpush.bf16.msra.mxu0 %v294
        %361 = vmatmul.bf16.gmra.mxu0 %v279
        %v362 = vpop.f32.mrf.mxu0
        %v363 = vadd.f32 0.0, %v362
        %v364 = vpop.f32.mrf.mxu0
        %v365 = vadd.f32 0.0, %v364
        %366 = vmatmul.bf16.gmra.mxu0 %v282
        %v367 = vpop.f32.mrf.mxu0
        %v368 = vadd.f32 0.0, %v367
        %v369 = vpop.f32.mrf.mxu0
        %v370 = vadd.f32 0.0, %v369
        %371 = vdwg.mxu0
        %v372 = vtanh.pop %v306
        %v373 = vtanh.pop %v325
        %v374 = vtanh.pop %v344
        %v375 = vtanh.pop %v363
        %v376 = vtanh.pop %v308
        %v377 = vtanh.pop %v327
        %v378 = vtanh.pop %v346
        %v379 = vtanh.pop %v365
        %v380 = vtanh.pop %v311
        %v381 = vtanh.pop %v330
        %v382 = vtanh.pop %v349
        %v383 = vtanh.pop %v368
        %v384 = vtanh.pop %v313
        %v385 = vtanh.pop %v332
        %v386 = vtanh.pop %v351
        %v387 = vtanh.pop %v370
        %v388 = vld [vmem:[%s2] sm:$0xf]
        %v389 = vld [vmem:[%s2 + $0x4] sm:$0xf]
        %v390 = vld [vmem:[%s2 + $0x8] sm:$0xf]
        %v391 = vld [vmem:[%s2 + $0xc] sm:$0xf]
        %v392 = vpack.c.bf16 %v376, %v372
        %v393 = vpack.c.bf16 %v377, %v373
        %v394 = vpack.c.bf16 %v378, %v374
        %v395 = vpack.c.bf16 %v379, %v375
        %v396 = vpack.c.bf16 %v384, %v380
        %v397 = vpack.c.bf16 %v385, %v381
        %v398 = vpack.c.bf16 %v386, %v382
        %v399 = vpack.c.bf16 %v387, %v383
        %v400 = vld [vmem:[%s3] sm:$0xff]
        %v401 = vld [vmem:[%s3 + $0x8] sm:$0xff]
        %v402 = vld [vmem:[%s3 + $0x10] sm:$0xff]
        %v403 = vld [vmem:[%s3 + $0x18] sm:$0xff]
        %405 = vset.pattern.permute.xlu0 0
        %406 = vperm.xlu0 %405, %v400
        %v407 = vpop.permute.xlu0 %406
        %410 = vset.pattern.permute.xlu0 0
        %411 = vperm.xlu0 %410, %v401
        %v412 = vpop.permute.xlu0 %411
        %415 = vset.pattern.permute.xlu0 0
        %416 = vperm.xlu0 %415, %v402
        %v417 = vpop.permute.xlu0 %416
        %420 = vset.pattern.permute.xlu0 0
        %421 = vperm.xlu0 %420, %v403
        %v422 = vpop.permute.xlu0 %421
        %v428 = vunpack.c.l.b16 %v388
        %v429 = vunpack.c.l.b16 %v389
        %v430 = vunpack.c.l.b16 %v390
        %v431 = vunpack.c.l.b16 %v391
        %v432 = vpack.c.b16 %v429, %v428
        %v433 = vpack.c.b16 %v431, %v430
        %vm434 = vcmask 261120
        %v436 = vsel %vm434, %v432, 0
        %v439 = vsel %vm434, %v433, 0
        %441 = vmatpush.bf16.msra.mxu0 0
        %442 = vmatpush.bf16.msra.mxu0 0
        %443 = vmatpush.bf16.msra.mxu0 0
        %444 = vmatpush.bf16.msra.mxu0 0
        %445 = vmatpush.bf16.msra.mxu0 0
        %446 = vmatpush.bf16.msra.mxu0 0
        %447 = vmatpush.bf16.msra.mxu0 %v396
        %448 = vmatpush.bf16.msra.mxu0 %v392
        %449 = vmatmul.bf16.gmra.mxu0 %v436
        %v450 = vpop.f32.mrf.mxu0
        %v451 = vadd.f32 %v407, %v450
        %v452 = vpop.f32.mrf.mxu0
        %v453 = vadd.f32 %v412, %v452
        %454 = vmatmul.bf16.gmra.mxu0 %v439
        %v455 = vpop.f32.mrf.mxu0
        %v456 = vadd.f32 %v417, %v455
        %v457 = vpop.f32.mrf.mxu0
        %v458 = vadd.f32 %v422, %v457
        %459 = vdwg.mxu0
        %460 = vmatpush.bf16.msra.mxu0 0
        %461 = vmatpush.bf16.msra.mxu0 0
        %462 = vmatpush.bf16.msra.mxu0 0
        %463 = vmatpush.bf16.msra.mxu0 0
        %464 = vmatpush.bf16.msra.mxu0 0
        %465 = vmatpush.bf16.msra.mxu0 0
        %466 = vmatpush.bf16.msra.mxu0 %v397
        %467 = vmatpush.bf16.msra.mxu0 %v393
        %468 = vmatmul.bf16.gmra.mxu0 %v436
        %v469 = vpop.f32.mrf.mxu0
        %v470 = vadd.f32 %v407, %v469
        %v471 = vpop.f32.mrf.mxu0
        %v472 = vadd.f32 %v412, %v471
        %473 = vmatmul.bf16.gmra.mxu0 %v439
        %v474 = vpop.f32.mrf.mxu0
        %v475 = vadd.f32 %v417, %v474
        %v476 = vpop.f32.mrf.mxu0
        %v477 = vadd.f32 %v422, %v476
        %478 = vdwg.mxu0
        %479 = vmatpush.bf16.msra.mxu0 0
        %480 = vmatpush.bf16.msra.mxu0 0
        %481 = vmatpush.bf16.msra.mxu0 0
        %482 = vmatpush.bf16.msra.mxu0 0
        %483 = vmatpush.bf16.msra.mxu0 0
        %484 = vmatpush.bf16.msra.mxu0 0
        %485 = vmatpush.bf16.msra.mxu0 %v398
        %486 = vmatpush.bf16.msra.mxu0 %v394
        %487 = vmatmul.bf16.gmra.mxu0 %v436
        %v488 = vpop.f32.mrf.mxu0
        %v489 = vadd.f32 %v407, %v488
        %v490 = vpop.f32.mrf.mxu0
        %v491 = vadd.f32 %v412, %v490
        %492 = vmatmul.bf16.gmra.mxu0 %v439
        %v493 = vpop.f32.mrf.mxu0
        %v494 = vadd.f32 %v417, %v493
        %v495 = vpop.f32.mrf.mxu0
        %v496 = vadd.f32 %v422, %v495
        %497 = vdwg.mxu0
        %498 = vmatpush.bf16.msra.mxu0 0
        %499 = vmatpush.bf16.msra.mxu0 0
        %500 = vmatpush.bf16.msra.mxu0 0
        %501 = vmatpush.bf16.msra.mxu0 0
        %502 = vmatpush.bf16.msra.mxu0 0
        %503 = vmatpush.bf16.msra.mxu0 0
        %504 = vmatpush.bf16.msra.mxu0 %v399
        %505 = vmatpush.bf16.msra.mxu0 %v395
        %506 = vmatmul.bf16.gmra.mxu0 %v436
        %v507 = vpop.f32.mrf.mxu0
        %v508 = vadd.f32 %v407, %v507
        %v509 = vpop.f32.mrf.mxu0
        %v510 = vadd.f32 %v412, %v509
        %511 = vmatmul.bf16.gmra.mxu0 %v439
        %v512 = vpop.f32.mrf.mxu0
        %v513 = vadd.f32 %v417, %v512
        %v514 = vpop.f32.mrf.mxu0
        %v515 = vadd.f32 %v422, %v514
        %516 = vdwg.mxu0
        %v517 = vtanh.pop %v451
        %v518 = vtanh.pop %v470
        %v519 = vtanh.pop %v489
        %v520 = vtanh.pop %v508
        %v521 = vtanh.pop %v453
        %v522 = vtanh.pop %v472
        %v523 = vtanh.pop %v491
        %v524 = vtanh.pop %v510
        %v525 = vtanh.pop %v456
        %v526 = vtanh.pop %v475
        %v527 = vtanh.pop %v494
        %v528 = vtanh.pop %v513
        %v529 = vtanh.pop %v458
        %v530 = vtanh.pop %v477
        %v531 = vtanh.pop %v496
        %v532 = vtanh.pop %v515
        %s533 = scalar_lea.vmem %s2, 16
        %v534 = vld [vmem:[%s533] sm:$0xf]
        %v535 = vld [vmem:[%s533 + $0x4] sm:$0xf]
        %v536 = vld [vmem:[%s533 + $0x8] sm:$0xf]
        %v537 = vld [vmem:[%s533 + $0xc] sm:$0xf]
        %v538 = vpack.c.bf16 %v521, %v517
        %v539 = vpack.c.bf16 %v522, %v518
        %v540 = vpack.c.bf16 %v523, %v519
        %v541 = vpack.c.bf16 %v524, %v520
        %v542 = vpack.c.bf16 %v529, %v525
        %v543 = vpack.c.bf16 %v530, %v526
        %v544 = vpack.c.bf16 %v531, %v527
        %v545 = vpack.c.bf16 %v532, %v528
        %s546 = scalar_lea.vmem %s3, 32
        %v547 = vld [vmem:[%s546] sm:$0xff]
        %v548 = vld [vmem:[%s546 + $0x8] sm:$0xff]
        %v549 = vld [vmem:[%s546 + $0x10] sm:$0xff]
        %v550 = vld [vmem:[%s546 + $0x18] sm:$0xff]
        %552 = vset.pattern.permute.xlu0 0
        %553 = vperm.xlu0 %552, %v547
        %v554 = vpop.permute.xlu0 %553
        %557 = vset.pattern.permute.xlu0 0
        %558 = vperm.xlu0 %557, %v548
        %v559 = vpop.permute.xlu0 %558
        %562 = vset.pattern.permute.xlu0 0
        %563 = vperm.xlu0 %562, %v549
        %v564 = vpop.permute.xlu0 %563
        %567 = vset.pattern.permute.xlu0 0
        %568 = vperm.xlu0 %567, %v550
        %v569 = vpop.permute.xlu0 %568
        %v575 = vunpack.c.l.b16 %v534
        %v576 = vunpack.c.l.b16 %v535
        %v577 = vunpack.c.l.b16 %v536
        %v578 = vunpack.c.l.b16 %v537
        %v579 = vpack.c.b16 %v576, %v575
        %v580 = vpack.c.b16 %v578, %v577
        %v582 = vsel %vm434, %v579, 0
        %v585 = vsel %vm434, %v580, 0
        %587 = vmatpush.bf16.msra.mxu0 0
        %588 = vmatpush.bf16.msra.mxu0 0
        %589 = vmatpush.bf16.msra.mxu0 0
        %590 = vmatpush.bf16.msra.mxu0 0
        %591 = vmatpush.bf16.msra.mxu0 0
        %592 = vmatpush.bf16.msra.mxu0 0
        %593 = vmatpush.bf16.msra.mxu0 %v542
        %594 = vmatpush.bf16.msra.mxu0 %v538
        %595 = vmatmul.bf16.gmra.mxu0 %v582
        %v596 = vpop.f32.mrf.mxu0
        %v597 = vadd.f32 %v554, %v596
        %v598 = vpop.f32.mrf.mxu0
        %v599 = vadd.f32 %v559, %v598
        %600 = vmatmul.bf16.gmra.mxu0 %v585
        %v601 = vpop.f32.mrf.mxu0
        %v602 = vadd.f32 %v564, %v601
        %v603 = vpop.f32.mrf.mxu0
        %v604 = vadd.f32 %v569, %v603
        %605 = vdwg.mxu0
        %606 = vmatpush.bf16.msra.mxu0 0
        %607 = vmatpush.bf16.msra.mxu0 0
        %608 = vmatpush.bf16.msra.mxu0 0
        %609 = vmatpush.bf16.msra.mxu0 0
        %610 = vmatpush.bf16.msra.mxu0 0
        %611 = vmatpush.bf16.msra.mxu0 0
        %612 = vmatpush.bf16.msra.mxu0 %v543
        %613 = vmatpush.bf16.msra.mxu0 %v539
        %614 = vmatmul.bf16.gmra.mxu0 %v582
        %v615 = vpop.f32.mrf.mxu0
        %v616 = vadd.f32 %v554, %v615
        %v617 = vpop.f32.mrf.mxu0
        %v618 = vadd.f32 %v559, %v617
        %619 = vmatmul.bf16.gmra.mxu0 %v585
        %v620 = vpop.f32.mrf.mxu0
        %v621 = vadd.f32 %v564, %v620
        %v622 = vpop.f32.mrf.mxu0
        %v623 = vadd.f32 %v569, %v622
        %624 = vdwg.mxu0
        %625 = vmatpush.bf16.msra.mxu0 0
        %626 = vmatpush.bf16.msra.mxu0 0
        %627 = vmatpush.bf16.msra.mxu0 0
        %628 = vmatpush.bf16.msra.mxu0 0
        %629 = vmatpush.bf16.msra.mxu0 0
        %630 = vmatpush.bf16.msra.mxu0 0
        %631 = vmatpush.bf16.msra.mxu0 %v544
        %632 = vmatpush.bf16.msra.mxu0 %v540
        %633 = vmatmul.bf16.gmra.mxu0 %v582
        %v634 = vpop.f32.mrf.mxu0
        %v635 = vadd.f32 %v554, %v634
        %v636 = vpop.f32.mrf.mxu0
        %v637 = vadd.f32 %v559, %v636
        %638 = vmatmul.bf16.gmra.mxu0 %v585
        %v639 = vpop.f32.mrf.mxu0
        %v640 = vadd.f32 %v564, %v639
        %v641 = vpop.f32.mrf.mxu0
        %v642 = vadd.f32 %v569, %v641
        %643 = vdwg.mxu0
        %644 = vmatpush.bf16.msra.mxu0 0
        %645 = vmatpush.bf16.msra.mxu0 0
        %646 = vmatpush.bf16.msra.mxu0 0
        %647 = vmatpush.bf16.msra.mxu0 0
        %648 = vmatpush.bf16.msra.mxu0 0
        %649 = vmatpush.bf16.msra.mxu0 0
        %650 = vmatpush.bf16.msra.mxu0 %v545
        %651 = vmatpush.bf16.msra.mxu0 %v541
        %652 = vmatmul.bf16.gmra.mxu0 %v582
        %v653 = vpop.f32.mrf.mxu0
        %v654 = vadd.f32 %v554, %v653
        %v655 = vpop.f32.mrf.mxu0
        %v656 = vadd.f32 %v559, %v655
        %657 = vmatmul.bf16.gmra.mxu0 %v585
        %v658 = vpop.f32.mrf.mxu0
        %v659 = vadd.f32 %v564, %v658
        %v660 = vpop.f32.mrf.mxu0
        %v661 = vadd.f32 %v569, %v660
        %662 = vdwg.mxu0
        %v663 = vtanh.pop %v597
        %v664 = vtanh.pop %v616
        %v665 = vtanh.pop %v635
        %v666 = vtanh.pop %v654
        %v667 = vtanh.pop %v599
        %v668 = vtanh.pop %v618
        %v669 = vtanh.pop %v637
        %v670 = vtanh.pop %v656
        %v671 = vtanh.pop %v602
        %v672 = vtanh.pop %v621
        %v673 = vtanh.pop %v640
        %v674 = vtanh.pop %v659
        %v675 = vtanh.pop %v604
        %v676 = vtanh.pop %v623
        %v677 = vtanh.pop %v642
        %v678 = vtanh.pop %v661
        %v679 = vld [vmem:[%s4] sm:$0x1]
        %v680 = vpack.c.bf16 %v667, %v663
        %v681 = vpack.c.bf16 %v668, %v664
        %v682 = vpack.c.bf16 %v669, %v665
        %v683 = vpack.c.bf16 %v670, %v666
        %v684 = vpack.c.bf16 %v675, %v671
        %v685 = vpack.c.bf16 %v676, %v672
        %v686 = vpack.c.bf16 %v677, %v673
        %v687 = vpack.c.bf16 %v678, %v674
        %v688 = vld [vmem:[#allocation2] sm:$0x1]
        %690 = vset.pattern.permute.xlu0 0
        %691 = vperm.xlu0 %690, %v688
        %v692 = vpop.permute.xlu0 %691
        %v694 = vperm.slane %v692, 0
        %v696 = vsel %vm434, %v679, 0
        %698 = vmatpush.bf16.msra.mxu0 0
        %699 = vmatpush.bf16.msra.mxu0 0
        %700 = vmatpush.bf16.msra.mxu0 0
        %701 = vmatpush.bf16.msra.mxu0 0
        %702 = vmatpush.bf16.msra.mxu0 0
        %703 = vmatpush.bf16.msra.mxu0 0
        %704 = vmatpush.bf16.msra.mxu0 %v684
        %705 = vmatpush.bf16.msra.mxu0 %v680
        %706 = vmatmul.bf16.gmra.mxu0 %v696
        %v707 = vpop.f32.mrf.mxu0
        %v708 = vadd.f32 %v694, %v707
        %v709 = vpop.f32.mrf.mxu0
        %710 = vdwg.mxu0
        %711 = vmatpush.bf16.msra.mxu0 0
        %712 = vmatpush.bf16.msra.mxu0 0
        %713 = vmatpush.bf16.msra.mxu0 0
        %714 = vmatpush.bf16.msra.mxu0 0
        %715 = vmatpush.bf16.msra.mxu0 0
        %716 = vmatpush.bf16.msra.mxu0 0
        %717 = vmatpush.bf16.msra.mxu0 %v685
        %718 = vmatpush.bf16.msra.mxu0 %v681
        %719 = vmatmul.bf16.gmra.mxu0 %v696
        %v720 = vpop.f32.mrf.mxu0
        %v721 = vadd.f32 %v694, %v720
        %v722 = vpop.f32.mrf.mxu0
        %723 = vdwg.mxu0
        %724 = vmatpush.bf16.msra.mxu0 0
        %725 = vmatpush.bf16.msra.mxu0 0
        %726 = vmatpush.bf16.msra.mxu0 0
        %727 = vmatpush.bf16.msra.mxu0 0
        %728 = vmatpush.bf16.msra.mxu0 0
        %729 = vmatpush.bf16.msra.mxu0 0
        %730 = vmatpush.bf16.msra.mxu0 %v686
        %731 = vmatpush.bf16.msra.mxu0 %v682
        %732 = vmatmul.bf16.gmra.mxu0 %v696
        %v733 = vpop.f32.mrf.mxu0
        %v734 = vadd.f32 %v694, %v733
        %v735 = vpop.f32.mrf.mxu0
        %736 = vdwg.mxu0
        %737 = vmatpush.bf16.msra.mxu0 0
        %738 = vmatpush.bf16.msra.mxu0 0
        %739 = vmatpush.bf16.msra.mxu0 0
        %740 = vmatpush.bf16.msra.mxu0 0
        %741 = vmatpush.bf16.msra.mxu0 0
        %742 = vmatpush.bf16.msra.mxu0 0
        %743 = vmatpush.bf16.msra.mxu0 %v687
        %744 = vmatpush.bf16.msra.mxu0 %v683
        %745 = vmatmul.bf16.gmra.mxu0 %v696
        %v746 = vpop.f32.mrf.mxu0
        %v747 = vadd.f32 %v694, %v746
        %v748 = vpop.f32.mrf.mxu0
        %749 = vdwg.mxu0
        %v754 = vrot.slane %v721, 7
        %v755 = vrot.slane %v734, 6
        %v756 = vrot.slane %v747, 5
        %v757 = vsel %vm284, %v708, %v754
        %vm758 = vcmask 1042434
        %v759 = vsel %vm758, %v755, %v756
        %v760 = vsel %vm285, %v757, %v759
        %v762 = vlaneseq
        %vm763 = vcmp.ge.s32.totalorder %v762, 0
        %vm764 = vcmp.lt.s32.totalorder %v762, 512
        %vm765 = vmand %vm763, %vm764
        %766 = vst.msk [vmem:[%s247] sm:$0xf] %vm765, %v760
        %s767 = scalar_lea.vmem %s252, 8
        %v768 = vld [vmem:[%s767] sm:$0xff]
        %v769 = vld [vmem:[%s1] sm:$0xf]
        %v770 = vld [vmem:[%s1 + $0x4] sm:$0xf]
        %v771 = vld [vmem:[%s1 + $0x8] sm:$0xf]
        %v772 = vld [vmem:[%s1 + $0xc] sm:$0xf]
        %v777 = vunpack.c.l.b16 %v769
        %v778 = vunpack.c.l.b16 %v770
        %v779 = vunpack.c.l.b16 %v771
        %v780 = vunpack.c.l.b16 %v772
        %v781 = vpack.c.b16 %v778, %v777
        %v782 = vpack.c.b16 %v780, %v779
        %784 = vst [vmem:[#allocation1] ss:$4 sm:$0xff] %v768
        %v785 = vld.sshfl [vmem:[#allocation1] sm:$0xff pattern:$0x73625140]
        %v786 = vld.sshfl [vmem:[#allocation1 + $0x8] sm:$0xff pattern:$0x73625140]
        %v787 = vld.sshfl [vmem:[#allocation1 + $0x10] sm:$0xff pattern:$0x73625140]
        %v788 = vld.sshfl [vmem:[#allocation1 + $0x18] sm:$0xff pattern:$0x73625140]
        %v790 = vsel %vm277, %v781, 0
        %v793 = vsel %vm277, %v782, 0
        %v795 = vand.u32 %v785, %v287
        %v797 = vand.u32 %v786, %v287
        %v799 = vand.u32 %v787, %v287
        %v801 = vand.u32 %v788, %v287
        %803 = vmatpush.bf16.msra.mxu0 0
        %804 = vmatpush.bf16.msra.mxu0 0
        %805 = vmatpush.bf16.msra.mxu0 0
        %806 = vmatpush.bf16.msra.mxu0 0
        %807 = vmatpush.bf16.msra.mxu0 0
        %808 = vmatpush.bf16.msra.mxu0 0
        %809 = vmatpush.bf16.msra.mxu0 0
        %810 = vmatpush.bf16.msra.mxu0 %v795
        %811 = vmatmul.bf16.gmra.mxu0 %v790
        %v812 = vpop.f32.mrf.mxu0
        %v813 = vadd.f32 0.0, %v812
        %v814 = vpop.f32.mrf.mxu0
        %v815 = vadd.f32 0.0, %v814
        %816 = vmatmul.bf16.gmra.mxu0 %v793
        %v817 = vpop.f32.mrf.mxu0
        %v818 = vadd.f32 0.0, %v817
        %v819 = vpop.f32.mrf.mxu0
        %v820 = vadd.f32 0.0, %v819
        %821 = vdwg.mxu0
        %822 = vmatpush.bf16.msra.mxu0 0
        %823 = vmatpush.bf16.msra.mxu0 0
        %824 = vmatpush.bf16.msra.mxu0 0
        %825 = vmatpush.bf16.msra.mxu0 0
        %826 = vmatpush.bf16.msra.mxu0 0
        %827 = vmatpush.bf16.msra.mxu0 0
        %828 = vmatpush.bf16.msra.mxu0 0
        %829 = vmatpush.bf16.msra.mxu0 %v797
        %830 = vmatmul.bf16.gmra.mxu0 %v790
        %v831 = vpop.f32.mrf.mxu0
        %v832 = vadd.f32 0.0, %v831
        %v833 = vpop.f32.mrf.mxu0
        %v834 = vadd.f32 0.0, %v833
        %835 = vmatmul.bf16.gmra.mxu0 %v793
        %v836 = vpop.f32.mrf.mxu0
        %v837 = vadd.f32 0.0, %v836
        %v838 = vpop.f32.mrf.mxu0
        %v839 = vadd.f32 0.0, %v838
        %840 = vdwg.mxu0
        %841 = vmatpush.bf16.msra.mxu0 0
        %842 = vmatpush.bf16.msra.mxu0 0
        %843 = vmatpush.bf16.msra.mxu0 0
        %844 = vmatpush.bf16.msra.mxu0 0
        %845 = vmatpush.bf16.msra.mxu0 0
        %846 = vmatpush.bf16.msra.mxu0 0
        %847 = vmatpush.bf16.msra.mxu0 0
        %848 = vmatpush.bf16.msra.mxu0 %v799
        %849 = vmatmul.bf16.gmra.mxu0 %v790
        %v850 = vpop.f32.mrf.mxu0
        %v851 = vadd.f32 0.0, %v850
        %v852 = vpop.f32.mrf.mxu0
        %v853 = vadd.f32 0.0, %v852
        %854 = vmatmul.bf16.gmra.mxu0 %v793
        %v855 = vpop.f32.mrf.mxu0
        %v856 = vadd.f32 0.0, %v855
        %v857 = vpop.f32.mrf.mxu0
        %v858 = vadd.f32 0.0, %v857
        %859 = vdwg.mxu0
        %860 = vmatpush.bf16.msra.mxu0 0
        %861 = vmatpush.bf16.msra.mxu0 0
        %862 = vmatpush.bf16.msra.mxu0 0
        %863 = vmatpush.bf16.msra.mxu0 0
        %864 = vmatpush.bf16.msra.mxu0 0
        %865 = vmatpush.bf16.msra.mxu0 0
        %866 = vmatpush.bf16.msra.mxu0 0
        %867 = vmatpush.bf16.msra.mxu0 %v801
        %868 = vmatmul.bf16.gmra.mxu0 %v790
        %v869 = vpop.f32.mrf.mxu0
        %v870 = vadd.f32 0.0, %v869
        %v871 = vpop.f32.mrf.mxu0
        %v872 = vadd.f32 0.0, %v871
        %873 = vmatmul.bf16.gmra.mxu0 %v793
        %v874 = vpop.f32.mrf.mxu0
        %v875 = vadd.f32 0.0, %v874
        %v876 = vpop.f32.mrf.mxu0
        %v877 = vadd.f32 0.0, %v876
        %878 = vdwg.mxu0
        %v879 = vtanh.pop %v813
        %v880 = vtanh.pop %v832
        %v881 = vtanh.pop %v851
        %v882 = vtanh.pop %v870
        %v883 = vtanh.pop %v815
        %v884 = vtanh.pop %v834
        %v885 = vtanh.pop %v853
        %v886 = vtanh.pop %v872
        %v887 = vtanh.pop %v818
        %v888 = vtanh.pop %v837
        %v889 = vtanh.pop %v856
        %v890 = vtanh.pop %v875
        %v891 = vtanh.pop %v820
        %v892 = vtanh.pop %v839
        %v893 = vtanh.pop %v858
        %v894 = vtanh.pop %v877
        %v895 = vld [vmem:[%s2] sm:$0xf]
        %v896 = vld [vmem:[%s2 + $0x4] sm:$0xf]
        %v897 = vld [vmem:[%s2 + $0x8] sm:$0xf]
        %v898 = vld [vmem:[%s2 + $0xc] sm:$0xf]
        %v899 = vpack.c.bf16 %v883, %v879
        %v900 = vpack.c.bf16 %v884, %v880
        %v901 = vpack.c.bf16 %v885, %v881
        %v902 = vpack.c.bf16 %v886, %v882
        %v903 = vpack.c.bf16 %v891, %v887
        %v904 = vpack.c.bf16 %v892, %v888
        %v905 = vpack.c.bf16 %v893, %v889
        %v906 = vpack.c.bf16 %v894, %v890
        %v907 = vld [vmem:[%s3] sm:$0xff]
        %v908 = vld [vmem:[%s3 + $0x8] sm:$0xff]
        %v909 = vld [vmem:[%s3 + $0x10] sm:$0xff]
        %v910 = vld [vmem:[%s3 + $0x18] sm:$0xff]
        %912 = vset.pattern.permute.xlu0 0
        %913 = vperm.xlu0 %912, %v907
        %v914 = vpop.permute.xlu0 %913
        %917 = vset.pattern.permute.xlu0 0
        %918 = vperm.xlu0 %917, %v908
        %v919 = vpop.permute.xlu0 %918
        %922 = vset.pattern.permute.xlu0 0
        %923 = vperm.xlu0 %922, %v909
        %v924 = vpop.permute.xlu0 %923
        %927 = vset.pattern.permute.xlu0 0
        %928 = vperm.xlu0 %927, %v910
        %v929 = vpop.permute.xlu0 %928
        %v935 = vunpack.c.l.b16 %v895
        %v936 = vunpack.c.l.b16 %v896
        %v937 = vunpack.c.l.b16 %v897
        %v938 = vunpack.c.l.b16 %v898
        %v939 = vpack.c.b16 %v936, %v935
        %v940 = vpack.c.b16 %v938, %v937
        %v942 = vsel %vm434, %v939, 0
        %v945 = vsel %vm434, %v940, 0
        %947 = vmatpush.bf16.msra.mxu0 0
        %948 = vmatpush.bf16.msra.mxu0 0
        %949 = vmatpush.bf16.msra.mxu0 0
        %950 = vmatpush.bf16.msra.mxu0 0
        %951 = vmatpush.bf16.msra.mxu0 0
        %952 = vmatpush.bf16.msra.mxu0 0
        %953 = vmatpush.bf16.msra.mxu0 %v903
        %954 = vmatpush.bf16.msra.mxu0 %v899
        %955 = vmatmul.bf16.gmra.mxu0 %v942
        %v956 = vpop.f32.mrf.mxu0
        %v957 = vadd.f32 %v914, %v956
        %v958 = vpop.f32.mrf.mxu0
        %v959 = vadd.f32 %v919, %v958
        %960 = vmatmul.bf16.gmra.mxu0 %v945
        %v961 = vpop.f32.mrf.mxu0
        %v962 = vadd.f32 %v924, %v961
        %v963 = vpop.f32.mrf.mxu0
        %v964 = vadd.f32 %v929, %v963
        %965 = vdwg.mxu0
        %966 = vmatpush.bf16.msra.mxu0 0
        %967 = vmatpush.bf16.msra.mxu0 0
        %968 = vmatpush.bf16.msra.mxu0 0
        %969 = vmatpush.bf16.msra.mxu0 0
        %970 = vmatpush.bf16.msra.mxu0 0
        %971 = vmatpush.bf16.msra.mxu0 0
        %972 = vmatpush.bf16.msra.mxu0 %v904
        %973 = vmatpush.bf16.msra.mxu0 %v900
        %974 = vmatmul.bf16.gmra.mxu0 %v942
        %v975 = vpop.f32.mrf.mxu0
        %v976 = vadd.f32 %v914, %v975
        %v977 = vpop.f32.mrf.mxu0
        %v978 = vadd.f32 %v919, %v977
        %979 = vmatmul.bf16.gmra.mxu0 %v945
        %v980 = vpop.f32.mrf.mxu0
        %v981 = vadd.f32 %v924, %v980
        %v982 = vpop.f32.mrf.mxu0
        %v983 = vadd.f32 %v929, %v982
        %984 = vdwg.mxu0
        %985 = vmatpush.bf16.msra.mxu0 0
        %986 = vmatpush.bf16.msra.mxu0 0
        %987 = vmatpush.bf16.msra.mxu0 0
        %988 = vmatpush.bf16.msra.mxu0 0
        %989 = vmatpush.bf16.msra.mxu0 0
        %990 = vmatpush.bf16.msra.mxu0 0
        %991 = vmatpush.bf16.msra.mxu0 %v905
        %992 = vmatpush.bf16.msra.mxu0 %v901
        %993 = vmatmul.bf16.gmra.mxu0 %v942
        %v994 = vpop.f32.mrf.mxu0
        %v995 = vadd.f32 %v914, %v994
        %v996 = vpop.f32.mrf.mxu0
        %v997 = vadd.f32 %v919, %v996
        %998 = vmatmul.bf16.gmra.mxu0 %v945
        %v999 = vpop.f32.mrf.mxu0
        %v1000 = vadd.f32 %v924, %v999
        %v1001 = vpop.f32.mrf.mxu0
        %v1002 = vadd.f32 %v929, %v1001
        %1003 = vdwg.mxu0
        %1004 = vmatpush.bf16.msra.mxu0 0
        %1005 = vmatpush.bf16.msra.mxu0 0
        %1006 = vmatpush.bf16.msra.mxu0 0
        %1007 = vmatpush.bf16.msra.mxu0 0
        %1008 = vmatpush.bf16.msra.mxu0 0
        %1009 = vmatpush.bf16.msra.mxu0 0
        %1010 = vmatpush.bf16.msra.mxu0 %v906
        %1011 = vmatpush.bf16.msra.mxu0 %v902
        %1012 = vmatmul.bf16.gmra.mxu0 %v942
        %v1013 = vpop.f32.mrf.mxu0
        %v1014 = vadd.f32 %v914, %v1013
        %v1015 = vpop.f32.mrf.mxu0
        %v1016 = vadd.f32 %v919, %v1015
        %1017 = vmatmul.bf16.gmra.mxu0 %v945
        %v1018 = vpop.f32.mrf.mxu0
        %v1019 = vadd.f32 %v924, %v1018
        %v1020 = vpop.f32.mrf.mxu0
        %v1021 = vadd.f32 %v929, %v1020
        %1022 = vdwg.mxu0
        %v1023 = vtanh.pop %v957
        %v1024 = vtanh.pop %v976
        %v1025 = vtanh.pop %v995
        %v1026 = vtanh.pop %v1014
        %v1027 = vtanh.pop %v959
        %v1028 = vtanh.pop %v978
        %v1029 = vtanh.pop %v997
        %v1030 = vtanh.pop %v1016
        %v1031 = vtanh.pop %v962
        %v1032 = vtanh.pop %v981
        %v1033 = vtanh.pop %v1000
        %v1034 = vtanh.pop %v1019
        %v1035 = vtanh.pop %v964
        %v1036 = vtanh.pop %v983
        %v1037 = vtanh.pop %v1002
        %v1038 = vtanh.pop %v1021
        %v1039 = vld [vmem:[%s533] sm:$0xf]
        %v1040 = vld [vmem:[%s533 + $0x4] sm:$0xf]
        %v1041 = vld [vmem:[%s533 + $0x8] sm:$0xf]
        %v1042 = vld [vmem:[%s533 + $0xc] sm:$0xf]
        %v1043 = vpack.c.bf16 %v1027, %v1023
        %v1044 = vpack.c.bf16 %v1028, %v1024
        %v1045 = vpack.c.bf16 %v1029, %v1025
        %v1046 = vpack.c.bf16 %v1030, %v1026
        %v1047 = vpack.c.bf16 %v1035, %v1031
        %v1048 = vpack.c.bf16 %v1036, %v1032
        %v1049 = vpack.c.bf16 %v1037, %v1033
        %v1050 = vpack.c.bf16 %v1038, %v1034
        %v1051 = vld [vmem:[%s546] sm:$0xff]
        %v1052 = vld [vmem:[%s546 + $0x8] sm:$0xff]
        %v1053 = vld [vmem:[%s546 + $0x10] sm:$0xff]
        %v1054 = vld [vmem:[%s546 + $0x18] sm:$0xff]
        %1056 = vset.pattern.permute.xlu0 0
        %1057 = vperm.xlu0 %1056, %v1051
        %v1058 = vpop.permute.xlu0 %1057
        %1061 = vset.pattern.permute.xlu0 0
        %1062 = vperm.xlu0 %1061, %v1052
        %v1063 = vpop.permute.xlu0 %1062
        %1066 = vset.pattern.permute.xlu0 0
        %1067 = vperm.xlu0 %1066, %v1053
        %v1068 = vpop.permute.xlu0 %1067
        %1071 = vset.pattern.permute.xlu0 0
        %1072 = vperm.xlu0 %1071, %v1054
        %v1073 = vpop.permute.xlu0 %1072
        %v1079 = vunpack.c.l.b16 %v1039
        %v1080 = vunpack.c.l.b16 %v1040
        %v1081 = vunpack.c.l.b16 %v1041
        %v1082 = vunpack.c.l.b16 %v1042
        %v1083 = vpack.c.b16 %v1080, %v1079
        %v1084 = vpack.c.b16 %v1082, %v1081
        %v1086 = vsel %vm434, %v1083, 0
        %v1089 = vsel %vm434, %v1084, 0
        %1091 = vmatpush.bf16.msra.mxu0 0
        %1092 = vmatpush.bf16.msra.mxu0 0
        %1093 = vmatpush.bf16.msra.mxu0 0
        %1094 = vmatpush.bf16.msra.mxu0 0
        %1095 = vmatpush.bf16.msra.mxu0 0
        %1096 = vmatpush.bf16.msra.mxu0 0
        %1097 = vmatpush.bf16.msra.mxu0 %v1047
        %1098 = vmatpush.bf16.msra.mxu0 %v1043
        %1099 = vmatmul.bf16.gmra.mxu0 %v1086
        %v1100 = vpop.f32.mrf.mxu0
        %v1101 = vadd.f32 %v1058, %v1100
        %v1102 = vpop.f32.mrf.mxu0
        %v1103 = vadd.f32 %v1063, %v1102
        %1104 = vmatmul.bf16.gmra.mxu0 %v1089
        %v1105 = vpop.f32.mrf.mxu0
        %v1106 = vadd.f32 %v1068, %v1105
        %v1107 = vpop.f32.mrf.mxu0
        %v1108 = vadd.f32 %v1073, %v1107
        %1109 = vdwg.mxu0
        %1110 = vmatpush.bf16.msra.mxu0 0
        %1111 = vmatpush.bf16.msra.mxu0 0
        %1112 = vmatpush.bf16.msra.mxu0 0
        %1113 = vmatpush.bf16.msra.mxu0 0
        %1114 = vmatpush.bf16.msra.mxu0 0
        %1115 = vmatpush.bf16.msra.mxu0 0
        %1116 = vmatpush.bf16.msra.mxu0 %v1048
        %1117 = vmatpush.bf16.msra.mxu0 %v1044
        %1118 = vmatmul.bf16.gmra.mxu0 %v1086
        %v1119 = vpop.f32.mrf.mxu0
        %v1120 = vadd.f32 %v1058, %v1119
        %v1121 = vpop.f32.mrf.mxu0
        %v1122 = vadd.f32 %v1063, %v1121
        %1123 = vmatmul.bf16.gmra.mxu0 %v1089
        %v1124 = vpop.f32.mrf.mxu0
        %v1125 = vadd.f32 %v1068, %v1124
        %v1126 = vpop.f32.mrf.mxu0
        %v1127 = vadd.f32 %v1073, %v1126
        %1128 = vdwg.mxu0
        %1129 = vmatpush.bf16.msra.mxu0 0
        %1130 = vmatpush.bf16.msra.mxu0 0
        %1131 = vmatpush.bf16.msra.mxu0 0
        %1132 = vmatpush.bf16.msra.mxu0 0
        %1133 = vmatpush.bf16.msra.mxu0 0
        %1134 = vmatpush.bf16.msra.mxu0 0
        %1135 = vmatpush.bf16.msra.mxu0 %v1049
        %1136 = vmatpush.bf16.msra.mxu0 %v1045
        %1137 = vmatmul.bf16.gmra.mxu0 %v1086
        %v1138 = vpop.f32.mrf.mxu0
        %v1139 = vadd.f32 %v1058, %v1138
        %v1140 = vpop.f32.mrf.mxu0
        %v1141 = vadd.f32 %v1063, %v1140
        %1142 = vmatmul.bf16.gmra.mxu0 %v1089
        %v1143 = vpop.f32.mrf.mxu0
        %v1144 = vadd.f32 %v1068, %v1143
        %v1145 = vpop.f32.mrf.mxu0
        %v1146 = vadd.f32 %v1073, %v1145
        %1147 = vdwg.mxu0
        %1148 = vmatpush.bf16.msra.mxu0 0
        %1149 = vmatpush.bf16.msra.mxu0 0
        %1150 = vmatpush.bf16.msra.mxu0 0
        %1151 = vmatpush.bf16.msra.mxu0 0
        %1152 = vmatpush.bf16.msra.mxu0 0
        %1153 = vmatpush.bf16.msra.mxu0 0
        %1154 = vmatpush.bf16.msra.mxu0 %v1050
        %1155 = vmatpush.bf16.msra.mxu0 %v1046
        %1156 = vmatmul.bf16.gmra.mxu0 %v1086
        %v1157 = vpop.f32.mrf.mxu0
        %v1158 = vadd.f32 %v1058, %v1157
        %v1159 = vpop.f32.mrf.mxu0
        %v1160 = vadd.f32 %v1063, %v1159
        %1161 = vmatmul.bf16.gmra.mxu0 %v1089
        %v1162 = vpop.f32.mrf.mxu0
        %v1163 = vadd.f32 %v1068, %v1162
        %v1164 = vpop.f32.mrf.mxu0
        %v1165 = vadd.f32 %v1073, %v1164
        %1166 = vdwg.mxu0
        %v1167 = vtanh.pop %v1101
        %v1168 = vtanh.pop %v1120
        %v1169 = vtanh.pop %v1139
        %v1170 = vtanh.pop %v1158
        %v1171 = vtanh.pop %v1103
        %v1172 = vtanh.pop %v1122
        %v1173 = vtanh.pop %v1141
        %v1174 = vtanh.pop %v1160
        %v1175 = vtanh.pop %v1106
        %v1176 = vtanh.pop %v1125
        %v1177 = vtanh.pop %v1144
        %v1178 = vtanh.pop %v1163
        %v1179 = vtanh.pop %v1108
        %v1180 = vtanh.pop %v1127
        %v1181 = vtanh.pop %v1146
        %v1182 = vtanh.pop %v1165
        %v1183 = vld [vmem:[%s4] sm:$0x1]
        %v1184 = vpack.c.bf16 %v1171, %v1167
        %v1185 = vpack.c.bf16 %v1172, %v1168
        %v1186 = vpack.c.bf16 %v1173, %v1169
        %v1187 = vpack.c.bf16 %v1174, %v1170
        %v1188 = vpack.c.bf16 %v1179, %v1175
        %v1189 = vpack.c.bf16 %v1180, %v1176
        %v1190 = vpack.c.bf16 %v1181, %v1177
        %v1191 = vpack.c.bf16 %v1182, %v1178
        %v1192 = vld [vmem:[#allocation2] sm:$0x1]
        %1194 = vset.pattern.permute.xlu0 0
        %1195 = vperm.xlu0 %1194, %v1192
        %v1196 = vpop.permute.xlu0 %1195
        %v1198 = vperm.slane %v1196, 0
        %v1200 = vsel %vm434, %v1183, 0
        %1202 = vmatpush.bf16.msra.mxu0 0
        %1203 = vmatpush.bf16.msra.mxu0 0
        %1204 = vmatpush.bf16.msra.mxu0 0
        %1205 = vmatpush.bf16.msra.mxu0 0
        %1206 = vmatpush.bf16.msra.mxu0 0
        %1207 = vmatpush.bf16.msra.mxu0 0
        %1208 = vmatpush.bf16.msra.mxu0 %v1188
        %1209 = vmatpush.bf16.msra.mxu0 %v1184
        %1210 = vmatmul.bf16.gmra.mxu0 %v1200
        %v1211 = vpop.f32.mrf.mxu0
        %v1212 = vadd.f32 %v1198, %v1211
        %v1213 = vpop.f32.mrf.mxu0
        %1214 = vdwg.mxu0
        %1215 = vmatpush.bf16.msra.mxu0 0
        %1216 = vmatpush.bf16.msra.mxu0 0
        %1217 = vmatpush.bf16.msra.mxu0 0
        %1218 = vmatpush.bf16.msra.mxu0 0
        %1219 = vmatpush.bf16.msra.mxu0 0
        %1220 = vmatpush.bf16.msra.mxu0 0
        %1221 = vmatpush.bf16.msra.mxu0 %v1189
        %1222 = vmatpush.bf16.msra.mxu0 %v1185
        %1223 = vmatmul.bf16.gmra.mxu0 %v1200
        %v1224 = vpop.f32.mrf.mxu0
        %v1225 = vadd.f32 %v1198, %v1224
        %v1226 = vpop.f32.mrf.mxu0
        %1227 = vdwg.mxu0
        %1228 = vmatpush.bf16.msra.mxu0 0
        %1229 = vmatpush.bf16.msra.mxu0 0
        %1230 = vmatpush.bf16.msra.mxu0 0
        %1231 = vmatpush.bf16.msra.mxu0 0
        %1232 = vmatpush.bf16.msra.mxu0 0
        %1233 = vmatpush.bf16.msra.mxu0 0
        %1234 = vmatpush.bf16.msra.mxu0 %v1190
        %1235 = vmatpush.bf16.msra.mxu0 %v1186
        %1236 = vmatmul.bf16.gmra.mxu0 %v1200
        %v1237 = vpop.f32.mrf.mxu0
        %v1238 = vadd.f32 %v1198, %v1237
        %v1239 = vpop.f32.mrf.mxu0
        %1240 = vdwg.mxu0
        %1241 = vmatpush.bf16.msra.mxu0 0
        %1242 = vmatpush.bf16.msra.mxu0 0
        %1243 = vmatpush.bf16.msra.mxu0 0
        %1244 = vmatpush.bf16.msra.mxu0 0
        %1245 = vmatpush.bf16.msra.mxu0 0
        %1246 = vmatpush.bf16.msra.mxu0 0
        %1247 = vmatpush.bf16.msra.mxu0 %v1191
        %1248 = vmatpush.bf16.msra.mxu0 %v1187
        %1249 = vmatmul.bf16.gmra.mxu0 %v1200
        %v1250 = vpop.f32.mrf.mxu0
        %v1251 = vadd.f32 %v1198, %v1250
        %v1252 = vpop.f32.mrf.mxu0
        %1253 = vdwg.mxu0
        %v1258 = vrot.slane %v1225, 7
        %v1259 = vrot.slane %v1238, 6
        %v1260 = vrot.slane %v1251, 5
        %v1261 = vsel %vm284, %v1212, %v1258
        %v1262 = vsel %vm758, %v1259, %v1260
        %v1263 = vsel %vm285, %v1261, %v1262
        %s1265 = scalar_lea.vmem %s247, 4 [#allocation3]
        %1266 = vst.msk [vmem:[%s1265] sm:$0xf] %vm765, %v1263
        %s1267 = sand.u32 %s161, 1
        %s1268 = scalar_lea.sflag [#allocation4], %s1267
        %s1269 = sand.u32 %s161, 1
        %s1270 = smul.addr %s1269, 8
        %s1271 = scalar_lea.vmem [#allocation3], %s1270
        // Predicated region
        $region45: #{tpu_custom_call.1} parent=43 // pred_check
          %p1272 = pneg %p171
        $region46: #{tpu_custom_call.1} parent=43 // pred_check_branch
          %1274 = sbr.rel (%p1272) target = $region48
        $region47: #{tpu_custom_call.1} parent=43 // pred_region
          %s1275 = smul.u32 8, %s22
          %1277 = vsyncadd %s1268, 0
          %s1278 = scalar_lea.hbm %s6, %s1275
          %s1280 = sshll.u32 %s1271, 4
          %s1281 = int_to_ptr.vmem [resolvable:$true] %s1280
          %s1282 = sshll.u32 %s1278, 4
          %s1283 = int_to_ptr.hbm [resolvable:$true] %s1282
          %1285 = dma.vmem_to_hbm [thread:$0]  %s1281, 128, %s1283, %s1268
        $region48: #{tpu_custom_call.1} parent=43 // pred_fallthru
          _
      $region44: #{tpu_custom_call.1} parent=5 // pred_fallthru
        _
      %p1286 = scmp.le.s32.totalorder 2, %s17
      // Predicated region
      $region49: #{tpu_custom_call.1} parent=5 // pred_check
        %p1287 = pneg %p1286
      $region50: #{tpu_custom_call.1} parent=5 // pred_check_branch
        %1289 = sbr.rel (%p1287) target = $region52
      $region51: #{tpu_custom_call.1} parent=5 // pred_region
        %s1290 = ssub.s32 %s17, 2
        // Predicated region
        $region53: #{tpu_custom_call.1} parent=51 // pred_check
          %p1291 = pneg %p177
        $region54: #{tpu_custom_call.1} parent=51 // pred_check_branch
          %1293 = sbr.rel (%p1291) target = $region56
        $region55: #{tpu_custom_call.1} parent=51 // pred_region
          %s1294 = sand.u32 %s162, 1
          %s1295 = scalar_lea.sflag [#allocation4], %s1294
          %s1296 = sand.u32 %s162, 1
          %s1297 = smul.addr %s1296, 8
          %s1298 = scalar_lea.vmem [#allocation3], %s1297
          %1300 = dma.done %s1295, 128
        $region56: #{tpu_custom_call.1} parent=51 // pred_fallthru
          _
      $region52: #{tpu_custom_call.1} parent=5 // pred_fallthru
        _
    $region6: #{tpu_custom_call.1} parent=1 // loop_footer
      %s21 = sadd.s32 1, %s17
    $region7: #{tpu_custom_call.1} parent=1 // loop_footer_branch
      %16 = sbr.rel target = $region3
    $region8: #{tpu_custom_call.1} parent=1 // loop_exit
      _
    %1301 = vsyncpa [#allocation4], 1
    %s1302 = scalar_lea.sflag [#allocation4], 1
    %1303 = vsyncpa %s1302, 1

</llo_original>
